<compile_context>
chip_gen: v5e
topology: v5e:2x2
jax: 0.10.0
libtpu: 0.0.40
codegen_flags: <defaults>
</compile_context>

<pallas_src>
import jax
import jax.numpy as jnp
from jax import lax
from jax.experimental import pallas as pl
from jax.experimental.pallas import tpu as pltpu

EPS = 1e-5
# 3x3 tap offsets in (kh, kw) row-major order, expressed as (dh-1, dw-1).
_OFFSETS = tuple((oh, ow) for oh in (-1, 0, 1) for ow in (-1, 0, 1))


# ----------------------------- kernel --------------------------------------


def _full_spec(shape):
    nd = len(shape)
    return pl.BlockSpec(shape, lambda i, _nd=nd: (0,) * _nd)


def _make_fused_kernel(n, h, w, c):
    m = n * h * w
    inv_m = 1.0 / float(m)

    def kernel(x_ref, w1_ref, w2_ref, w3_ref, consts_ref, masks_ref, out_ref):
        x = x_ref[...]                                    # (C, M) f32
        consts = consts_ref[...]                          # (C, 5)
        masks = masks_ref[...]                            # (9, 1, M)
        b1 = consts[:, 0:1]
        b2 = consts[:, 1:2]
        b3 = consts[:, 2:3]
        gamma = consts[:, 3:4]
        beta = consts[:, 4:5]

        def bn(y):
            # One-pass training-mode BN: sum + sum-of-squares, biased var,
            # then a single fused multiply-add per element.
            mu = jnp.sum(y, axis=1, keepdims=True) * inv_m            # (C,1)
            ex2 = jnp.sum(y * y, axis=1, keepdims=True) * inv_m       # (C,1)
            var = ex2 - mu * mu
            scale = gamma * lax.rsqrt(var + EPS)                      # EUP slot
            shift = beta - mu * scale
            return y * scale + shift

        def conv3x3(v, w_taps, b):
            # 9 accumulated tap-matmuls: W_tap(C,C) @ shifted(v)(C,M).
            # Shift is an in-kernel lane roll (XLU slot); boundary (zero-pad)
            # positions are killed by the precomputed masks.
            acc = None
            for t, (oh, ow) in enumerate(_OFFSETS):
                s = oh * w + ow
                if s == 0:
                    tap = v
                else:
                    tap = pltpu.roll(v, shift=(-s) % m, axis=1) * masks[t]
                term = jnp.dot(w_taps[t], tap,
                               preferred_element_type=jnp.float32)
                acc = term if acc is None else acc + term
            return acc + b

        w2_taps = w2_ref[...]                             # (9, C, C)
        w3_taps = w3_ref[...]                             # (9, C, C)

        # branch 1: conv1 (1x1) -> ReLU -> BN
        y1 = jnp.dot(w1_ref[...], x, preferred_element_type=jnp.float32) + b1
        x1 = bn(jnp.maximum(y1, 0.0))

        # branch 2: conv2 (3x3) -> ReLU -> BN -> conv3 (3x3) -> ReLU -> BN
        x2 = bn(jnp.maximum(conv3x3(x, w2_taps, b2), 0.0))
        x2 = bn(jnp.maximum(conv3x3(x2, w3_taps, b3), 0.0))

        # residual add + final BN
        out_ref[...] = bn(x1 + x2)

    return kernel


# ----------------------------- glue / wrapper -------------------------------


def _boundary_masks(n, h, w):
    """(9, 1, M) float masks: 1 where the 3x3 tap stays inside the image."""
    m = n * h * w
    mm = jnp.arange(m, dtype=jnp.int32)
    wi = mm % w
    hi = (mm // w) % h
    masks = []
    for oh, ow in _OFFSETS:
        valid = ((hi + oh >= 0) & (hi + oh < h) &
                 (wi + ow >= 0) & (wi + ow < w))
        masks.append(valid.astype(jnp.float32))
    return jnp.stack(masks, axis=0).reshape(9, 1, m)


@jax.jit
def resnet1_conv2d_block_forward(x_nchw, w1, b1, w2, b2, w3, b3, gamma, beta):
    """Forward pass matching resnet1_conv2D_block.forward (training-mode BN).

    x_nchw: (N, C, H, W) float32;  w1: (C, C, 1, 1);  w2, w3: (C, C, 3, 3)
    b1, b2, b3, gamma, beta: (C,).  Returns (N, C, H, W) float32.
    """
    n, c, h, w = x_nchw.shape
    m = n * h * w

    # channels-on-sublanes / spatial-on-lanes layout
    xcm = jnp.transpose(x_nchw, (1, 0, 2, 3)).astype(jnp.float32).reshape(c, m)

    # weight layout conversion (glue): OIHW -> per-tap (Cout, Cin) matrices
    w1m = w1[:, :, 0, 0].astype(jnp.float32)                          # (Co, Ci)
    w2t = jnp.transpose(w2, (2, 3, 0, 1)).astype(jnp.float32).reshape(9, c, c)
    w3t = jnp.transpose(w3, (2, 3, 0, 1)).astype(jnp.float32).reshape(9, c, c)

    # pack all per-channel vectors into one (C, 5) block: b1,b2,b3,gamma,beta
    consts = jnp.stack([b1, b2, b3, gamma, beta], axis=1).astype(jnp.float32)

    masks = _boundary_masks(n, h, w)                                  # (9,1,M)

    kernel = _make_fused_kernel(n, h, w, c)

    out_cm = pl.pallas_call(
        kernel,
        out_shape=jax.ShapeDtypeStruct((c, m), jnp.float32),
        grid=(1,),
        in_specs=[_full_spec((c, m)),
                  _full_spec((c, c)),
                  _full_spec((9, c, c)),
                  _full_spec((9, c, c)),
                  _full_spec((c, 5)),
                  _full_spec((9, 1, m))],
        out_specs=_full_spec((c, m)),
        compiler_params=pltpu.CompilerParams(
            dimension_semantics=("arbitrary",)),
    )(xcm, w1m, w2t, w3t, consts, masks)

    return jnp.transpose(out_cm.reshape(c, n, h, w), (1, 0, 2, 3))


# ----------------------------- reference (pure JAX) -------------------------


def _reference_forward(x, w1, b1, w2, b2, w3, b3, gamma, beta):
    def conv(x, wgt, bias, pad):
        y = lax.conv_general_dilated(
            x, wgt, window_strides=(1, 1), padding=((pad, pad), (pad, pad)),
            dimension_numbers=("NCHW", "OIHW", "NCHW"))
        return y + bias.reshape(1, -1, 1, 1)

    def bn(y):
        mu = jnp.mean(y, axis=(0, 2, 3), keepdims=True)
        var = jnp.mean((y - mu) ** 2, axis=(0, 2, 3), keepdims=True)
        return ((y - mu) / jnp.sqrt(var + EPS)
                * gamma.reshape(1, -1, 1, 1) + beta.reshape(1, -1, 1, 1))

    x1 = bn(jnp.maximum(conv(x, w1, b1, 0), 0.0))
    x2 = bn(jnp.maximum(conv(x, w2, b2, 1), 0.0))
    x2 = bn(jnp.maximum(conv(x2, w3, b3, 1), 0.0))
    return bn(x1 + x2)


# ----------------------------- main -----------------------------------------


if __name__ == "__main__":
    # resnet1_conv2D_block(in_channels, out_channels) requires the input to
    # already have out_channels channels (conv1 is CxC).  Pick C=4.
    N, C, H, W = 2, 4, 16, 16

    key = jax.random.PRNGKey(0)
    keys = jax.random.split(key, 8)

    def unif(k, shape, fan_in):
        bound = 1.0 / (fan_in ** 0.5)
        return jax.random.uniform(k, shape, jnp.float32, -bound, bound)

    x = jax.random.normal(keys[0], (N, C, H, W), jnp.float32)

    # Parameters in PyTorch layouts (deterministic synthetic init).
    w1 = unif(keys[1], (C, C, 1, 1), C * 1 * 1)
    b1 = unif(keys[2], (C,), C * 1 * 1)
    w2 = unif(keys[3], (C, C, 3, 3), C * 3 * 3)
    b2 = unif(keys[4], (C,), C * 3 * 3)
    w3 = unif(keys[5], (C, C, 3, 3), C * 3 * 3)
    b3 = unif(keys[6], (C,), C * 3 * 3)
    gamma = jnp.ones((C,), jnp.float32)   # nn.BatchNorm2d default init
    beta = jnp.zeros((C,), jnp.float32)

    out = resnet1_conv2d_block_forward(x, w1, b1, w2, b2, w3, b3, gamma, beta)
    out = jax.block_until_ready(out)

    ref = _reference_forward(x, w1, b1, w2, b2, w3, b3, gamma, beta)
    ref = jax.block_until_ready(ref)

    assert out.shape == (N, C, H, W) and out.dtype == jnp.float32
    max_err = float(jnp.max(jnp.abs(out - ref)))
    assert max_err < 5e-3, f"mismatch vs reference, max_err={max_err}"

    print("KERNEL_OK")
</pallas_src>

<mosaic_0001>
module attributes {stable_mosaic.version = 11 : i64} {
  func.func @kernel(%arg0: i32, %arg1: memref<4x512xf32, #tpu.memory_space<vmem>>, %arg2: memref<4x4xf32, #tpu.memory_space<vmem>>, %arg3: memref<9x4x4xf32, #tpu.memory_space<vmem>>, %arg4: memref<9x4x4xf32, #tpu.memory_space<vmem>>, %arg5: memref<4x5xf32, #tpu.memory_space<vmem>>, %arg6: memref<9x1x512xf32, #tpu.memory_space<vmem>>, %arg7: memref<4x512xf32, #tpu.memory_space<vmem>>) attributes {dimension_semantics = [#tpu.dimension_semantics<arbitrary>], iteration_bounds = array<i64: 1>, scalar_prefetch = 0 : i64, scratch_operands = 0 : i64, tpu.core_type = #tpu.core_type<tc>, window_params = [{pipeline_mode = #tpu.pipeline_mode<synchronous>, transform_indices = @transform_0, window_bounds = array<i64: 4, 512>}, {pipeline_mode = #tpu.pipeline_mode<synchronous>, transform_indices = @transform_1, window_bounds = array<i64: 4, 4>}, {pipeline_mode = #tpu.pipeline_mode<synchronous>, transform_indices = @transform_2, window_bounds = array<i64: 9, 4, 4>}, {pipeline_mode = #tpu.pipeline_mode<synchronous>, transform_indices = @transform_3, window_bounds = array<i64: 9, 4, 4>}, {pipeline_mode = #tpu.pipeline_mode<synchronous>, transform_indices = @transform_4, window_bounds = array<i64: 4, 5>}, {pipeline_mode = #tpu.pipeline_mode<synchronous>, transform_indices = @transform_5, window_bounds = array<i64: 9, 1, 512>}, {pipeline_mode = #tpu.pipeline_mode<synchronous>, transform_indices = @transform_6, window_bounds = array<i64: 4, 512>}]} {
    %c0 = arith.constant 0 : index
    %c0_0 = arith.constant 0 : index
    %0 = vector.load %arg1[%c0, %c0_0] : memref<4x512xf32, #tpu.memory_space<vmem>>, vector<4x512xf32>
    %c0_1 = arith.constant 0 : index
    %c0_2 = arith.constant 0 : index
    %1 = vector.load %arg5[%c0_1, %c0_2] : memref<4x5xf32, #tpu.memory_space<vmem>>, vector<4x5xf32>
    %c0_3 = arith.constant 0 : index
    %c0_4 = arith.constant 0 : index
    %c0_5 = arith.constant 0 : index
    %2 = vector.load %arg6[%c0_3, %c0_4, %c0_5] : memref<9x1x512xf32, #tpu.memory_space<vmem>>, vector<9x1x512xf32>
    %3 = vector.extract_strided_slice %1 {offsets = [0, 0], sizes = [4, 1], strides = [1, 1]} : vector<4x5xf32> to vector<4x1xf32>
    %4 = vector.extract_strided_slice %1 {offsets = [0, 1], sizes = [4, 1], strides = [1, 1]} : vector<4x5xf32> to vector<4x1xf32>
    %5 = vector.extract_strided_slice %1 {offsets = [0, 2], sizes = [4, 1], strides = [1, 1]} : vector<4x5xf32> to vector<4x1xf32>
    %6 = vector.extract_strided_slice %1 {offsets = [0, 3], sizes = [4, 1], strides = [1, 1]} : vector<4x5xf32> to vector<4x1xf32>
    %7 = vector.extract_strided_slice %1 {offsets = [0, 4], sizes = [4, 1], strides = [1, 1]} : vector<4x5xf32> to vector<4x1xf32>
    %c0_6 = arith.constant 0 : index
    %c0_7 = arith.constant 0 : index
    %c0_8 = arith.constant 0 : index
    %8 = vector.load %arg3[%c0_6, %c0_7, %c0_8] : memref<9x4x4xf32, #tpu.memory_space<vmem>>, vector<9x4x4xf32>
    %c0_9 = arith.constant 0 : index
    %c0_10 = arith.constant 0 : index
    %c0_11 = arith.constant 0 : index
    %9 = vector.load %arg4[%c0_9, %c0_10, %c0_11] : memref<9x4x4xf32, #tpu.memory_space<vmem>>, vector<9x4x4xf32>
    %c0_12 = arith.constant 0 : index
    %c0_13 = arith.constant 0 : index
    %10 = vector.load %arg2[%c0_12, %c0_13] : memref<4x4xf32, #tpu.memory_space<vmem>>, vector<4x4xf32>
    %cst = arith.constant dense<0.000000e+00> : vector<4x512xf32>
    %11 = tpu.matmul %10, %0, %cst {dimension_numbers = #tpu.dot_dimension_numbers<[1], [0], [0], [1], [0, 0, 1, 1], [], []>} : vector<4x4xf32>, vector<4x512xf32>, vector<4x512xf32> -> vector<4x512xf32>
    %12 = vector.broadcast %3 : vector<4x1xf32> to vector<4x512xf32>
    %13 = arith.addf %11, %12 : vector<4x512xf32>
    %cst_14 = arith.constant 0.000000e+00 : f32
    %14 = vector.broadcast %cst_14 : f32 to vector<4x512xf32>
    %15 = arith.maximumf %13, %14 : vector<4x512xf32>
    %cst_15 = arith.constant dense<0.000000e+00> : vector<4xf32>
    %16 = vector.multi_reduction <add>, %15, %cst_15 [1] : vector<4x512xf32> to vector<4xf32>
    %17 = vector.shape_cast %16 : vector<4xf32> to vector<4x1xf32>
    %cst_16 = arith.constant 0.001953125 : f32
    %18 = vector.broadcast %cst_16 : f32 to vector<4x1xf32>
    %19 = arith.mulf %17, %18 : vector<4x1xf32>
    %20 = arith.mulf %15, %15 : vector<4x512xf32>
    %cst_17 = arith.constant dense<0.000000e+00> : vector<4xf32>
    %21 = vector.multi_reduction <add>, %20, %cst_17 [1] : vector<4x512xf32> to vector<4xf32>
    %22 = vector.shape_cast %21 : vector<4xf32> to vector<4x1xf32>
    %cst_18 = arith.constant 0.001953125 : f32
    %23 = vector.broadcast %cst_18 : f32 to vector<4x1xf32>
    %24 = arith.mulf %22, %23 : vector<4x1xf32>
    %25 = arith.mulf %19, %19 : vector<4x1xf32>
    %26 = arith.subf %24, %25 : vector<4x1xf32>
    %cst_19 = arith.constant 9.99999974E-6 : f32
    %27 = vector.broadcast %cst_19 : f32 to vector<4x1xf32>
    %28 = arith.addf %26, %27 : vector<4x1xf32>
    %29 = math.rsqrt %28 : vector<4x1xf32>
    %30 = arith.mulf %6, %29 : vector<4x1xf32>
    %31 = arith.mulf %19, %30 : vector<4x1xf32>
    %32 = arith.subf %7, %31 : vector<4x1xf32>
    %33 = vector.broadcast %30 : vector<4x1xf32> to vector<4x512xf32>
    %34 = arith.mulf %15, %33 : vector<4x512xf32>
    %35 = vector.broadcast %32 : vector<4x1xf32> to vector<4x512xf32>
    %36 = arith.addf %34, %35 : vector<4x512xf32>
    %c17_i32 = arith.constant 17 : i32
    %37 = tpu.dynamic_rotate %0 by %c17_i32 dim 1 : vector<4x512xf32>, i32 -> vector<4x512xf32>
    %38 = vector.extract_strided_slice %2 {offsets = [0, 0, 0], sizes = [1, 1, 512], strides = [1, 1, 1]} : vector<9x1x512xf32> to vector<1x1x512xf32>
    %39 = vector.shape_cast %38 : vector<1x1x512xf32> to vector<1x512xf32>
    %40 = vector.broadcast %39 : vector<1x512xf32> to vector<4x512xf32>
    %41 = arith.mulf %37, %40 : vector<4x512xf32>
    %42 = vector.extract_strided_slice %8 {offsets = [0, 0, 0], sizes = [1, 4, 4], strides = [1, 1, 1]} : vector<9x4x4xf32> to vector<1x4x4xf32>
    %43 = vector.shape_cast %42 : vector<1x4x4xf32> to vector<4x4xf32>
    %cst_20 = arith.constant dense<0.000000e+00> : vector<4x512xf32>
    %44 = tpu.matmul %43, %41, %cst_20 {dimension_numbers = #tpu.dot_dimension_numbers<[1], [0], [0], [1], [0, 0, 1, 1], [], []>} : vector<4x4xf32>, vector<4x512xf32>, vector<4x512xf32> -> vector<4x512xf32>
    %c16_i32 = arith.constant 16 : i32
    %45 = tpu.dynamic_rotate %0 by %c16_i32 dim 1 : vector<4x512xf32>, i32 -> vector<4x512xf32>
    %46 = vector.extract_strided_slice %2 {offsets = [1, 0, 0], sizes = [1, 1, 512], strides = [1, 1, 1]} : vector<9x1x512xf32> to vector<1x1x512xf32>
    %47 = vector.shape_cast %46 : vector<1x1x512xf32> to vector<1x512xf32>
    %48 = vector.broadcast %47 : vector<1x512xf32> to vector<4x512xf32>
    %49 = arith.mulf %45, %48 : vector<4x512xf32>
    %50 = vector.extract_strided_slice %8 {offsets = [1, 0, 0], sizes = [1, 4, 4], strides = [1, 1, 1]} : vector<9x4x4xf32> to vector<1x4x4xf32>
    %51 = vector.shape_cast %50 : vector<1x4x4xf32> to vector<4x4xf32>
    %cst_21 = arith.constant dense<0.000000e+00> : vector<4x512xf32>
    %52 = tpu.matmul %51, %49, %cst_21 {dimension_numbers = #tpu.dot_dimension_numbers<[1], [0], [0], [1], [0, 0, 1, 1], [], []>} : vector<4x4xf32>, vector<4x512xf32>, vector<4x512xf32> -> vector<4x512xf32>
    %53 = arith.addf %44, %52 : vector<4x512xf32>
    %c15_i32 = arith.constant 15 : i32
    %54 = tpu.dynamic_rotate %0 by %c15_i32 dim 1 : vector<4x512xf32>, i32 -> vector<4x512xf32>
    %55 = vector.extract_strided_slice %2 {offsets = [2, 0, 0], sizes = [1, 1, 512], strides = [1, 1, 1]} : vector<9x1x512xf32> to vector<1x1x512xf32>
    %56 = vector.shape_cast %55 : vector<1x1x512xf32> to vector<1x512xf32>
    %57 = vector.broadcast %56 : vector<1x512xf32> to vector<4x512xf32>
    %58 = arith.mulf %54, %57 : vector<4x512xf32>
    %59 = vector.extract_strided_slice %8 {offsets = [2, 0, 0], sizes = [1, 4, 4], strides = [1, 1, 1]} : vector<9x4x4xf32> to vector<1x4x4xf32>
    %60 = vector.shape_cast %59 : vector<1x4x4xf32> to vector<4x4xf32>
    %cst_22 = arith.constant dense<0.000000e+00> : vector<4x512xf32>
    %61 = tpu.matmul %60, %58, %cst_22 {dimension_numbers = #tpu.dot_dimension_numbers<[1], [0], [0], [1], [0, 0, 1, 1], [], []>} : vector<4x4xf32>, vector<4x512xf32>, vector<4x512xf32> -> vector<4x512xf32>
    %62 = arith.addf %53, %61 : vector<4x512xf32>
    %c1_i32 = arith.constant 1 : i32
    %63 = tpu.dynamic_rotate %0 by %c1_i32 dim 1 : vector<4x512xf32>, i32 -> vector<4x512xf32>
    %64 = vector.extract_strided_slice %2 {offsets = [3, 0, 0], sizes = [1, 1, 512], strides = [1, 1, 1]} : vector<9x1x512xf32> to vector<1x1x512xf32>
    %65 = vector.shape_cast %64 : vector<1x1x512xf32> to vector<1x512xf32>
    %66 = vector.broadcast %65 : vector<1x512xf32> to vector<4x512xf32>
    %67 = arith.mulf %63, %66 : vector<4x512xf32>
    %68 = vector.extract_strided_slice %8 {offsets = [3, 0, 0], sizes = [1, 4, 4], strides = [1, 1, 1]} : vector<9x4x4xf32> to vector<1x4x4xf32>
    %69 = vector.shape_cast %68 : vector<1x4x4xf32> to vector<4x4xf32>
    %cst_23 = arith.constant dense<0.000000e+00> : vector<4x512xf32>
    %70 = tpu.matmul %69, %67, %cst_23 {dimension_numbers = #tpu.dot_dimension_numbers<[1], [0], [0], [1], [0, 0, 1, 1], [], []>} : vector<4x4xf32>, vector<4x512xf32>, vector<4x512xf32> -> vector<4x512xf32>
    %71 = arith.addf %62, %70 : vector<4x512xf32>
    %72 = vector.extract_strided_slice %8 {offsets = [4, 0, 0], sizes = [1, 4, 4], strides = [1, 1, 1]} : vector<9x4x4xf32> to vector<1x4x4xf32>
    %73 = vector.shape_cast %72 : vector<1x4x4xf32> to vector<4x4xf32>
    %cst_24 = arith.constant dense<0.000000e+00> : vector<4x512xf32>
    %74 = tpu.matmul %73, %0, %cst_24 {dimension_numbers = #tpu.dot_dimension_numbers<[1], [0], [0], [1], [0, 0, 1, 1], [], []>} : vector<4x4xf32>, vector<4x512xf32>, vector<4x512xf32> -> vector<4x512xf32>
    %75 = arith.addf %71, %74 : vector<4x512xf32>
    %c511_i32 = arith.constant 511 : i32
    %76 = tpu.dynamic_rotate %0 by %c511_i32 dim 1 : vector<4x512xf32>, i32 -> vector<4x512xf32>
    %77 = vector.extract_strided_slice %2 {offsets = [5, 0, 0], sizes = [1, 1, 512], strides = [1, 1, 1]} : vector<9x1x512xf32> to vector<1x1x512xf32>
    %78 = vector.shape_cast %77 : vector<1x1x512xf32> to vector<1x512xf32>
    %79 = vector.broadcast %78 : vector<1x512xf32> to vector<4x512xf32>
    %80 = arith.mulf %76, %79 : vector<4x512xf32>
    %81 = vector.extract_strided_slice %8 {offsets = [5, 0, 0], sizes = [1, 4, 4], strides = [1, 1, 1]} : vector<9x4x4xf32> to vector<1x4x4xf32>
    %82 = vector.shape_cast %81 : vector<1x4x4xf32> to vector<4x4xf32>
    %cst_25 = arith.constant dense<0.000000e+00> : vector<4x512xf32>
    %83 = tpu.matmul %82, %80, %cst_25 {dimension_numbers = #tpu.dot_dimension_numbers<[1], [0], [0], [1], [0, 0, 1, 1], [], []>} : vector<4x4xf32>, vector<4x512xf32>, vector<4x512xf32> -> vector<4x512xf32>
    %84 = arith.addf %75, %83 : vector<4x512xf32>
    %c497_i32 = arith.constant 497 : i32
    %85 = tpu.dynamic_rotate %0 by %c497_i32 dim 1 : vector<4x512xf32>, i32 -> vector<4x512xf32>
    %86 = vector.extract_strided_slice %2 {offsets = [6, 0, 0], sizes = [1, 1, 512], strides = [1, 1, 1]} : vector<9x1x512xf32> to vector<1x1x512xf32>
    %87 = vector.shape_cast %86 : vector<1x1x512xf32> to vector<1x512xf32>
    %88 = vector.broadcast %87 : vector<1x512xf32> to vector<4x512xf32>
    %89 = arith.mulf %85, %88 : vector<4x512xf32>
    %90 = vector.extract_strided_slice %8 {offsets = [6, 0, 0], sizes = [1, 4, 4], strides = [1, 1, 1]} : vector<9x4x4xf32> to vector<1x4x4xf32>
    %91 = vector.shape_cast %90 : vector<1x4x4xf32> to vector<4x4xf32>
    %cst_26 = arith.constant dense<0.000000e+00> : vector<4x512xf32>
    %92 = tpu.matmul %91, %89, %cst_26 {dimension_numbers = #tpu.dot_dimension_numbers<[1], [0], [0], [1], [0, 0, 1, 1], [], []>} : vector<4x4xf32>, vector<4x512xf32>, vector<4x512xf32> -> vector<4x512xf32>
    %93 = arith.addf %84, %92 : vector<4x512xf32>
    %c496_i32 = arith.constant 496 : i32
    %94 = tpu.dynamic_rotate %0 by %c496_i32 dim 1 : vector<4x512xf32>, i32 -> vector<4x512xf32>
    %95 = vector.extract_strided_slice %2 {offsets = [7, 0, 0], sizes = [1, 1, 512], strides = [1, 1, 1]} : vector<9x1x512xf32> to vector<1x1x512xf32>
    %96 = vector.shape_cast %95 : vector<1x1x512xf32> to vector<1x512xf32>
    %97 = vector.broadcast %96 : vector<1x512xf32> to vector<4x512xf32>
    %98 = arith.mulf %94, %97 : vector<4x512xf32>
    %99 = vector.extract_strided_slice %8 {offsets = [7, 0, 0], sizes = [1, 4, 4], strides = [1, 1, 1]} : vector<9x4x4xf32> to vector<1x4x4xf32>
    %100 = vector.shape_cast %99 : vector<1x4x4xf32> to vector<4x4xf32>
    %cst_27 = arith.constant dense<0.000000e+00> : vector<4x512xf32>
    %101 = tpu.matmul %100, %98, %cst_27 {dimension_numbers = #tpu.dot_dimension_numbers<[1], [0], [0], [1], [0, 0, 1, 1], [], []>} : vector<4x4xf32>, vector<4x512xf32>, vector<4x512xf32> -> vector<4x512xf32>
    %102 = arith.addf %93, %101 : vector<4x512xf32>
    %c495_i32 = arith.constant 495 : i32
    %103 = tpu.dynamic_rotate %0 by %c495_i32 dim 1 : vector<4x512xf32>, i32 -> vector<4x512xf32>
    %104 = vector.extract_strided_slice %2 {offsets = [8, 0, 0], sizes = [1, 1, 512], strides = [1, 1, 1]} : vector<9x1x512xf32> to vector<1x1x512xf32>
    %105 = vector.shape_cast %104 : vector<1x1x512xf32> to vector<1x512xf32>
    %106 = vector.broadcast %105 : vector<1x512xf32> to vector<4x512xf32>
    %107 = arith.mulf %103, %106 : vector<4x512xf32>
    %108 = vector.extract_strided_slice %8 {offsets = [8, 0, 0], sizes = [1, 4, 4], strides = [1, 1, 1]} : vector<9x4x4xf32> to vector<1x4x4xf32>
    %109 = vector.shape_cast %108 : vector<1x4x4xf32> to vector<4x4xf32>
    %cst_28 = arith.constant dense<0.000000e+00> : vector<4x512xf32>
    %110 = tpu.matmul %109, %107, %cst_28 {dimension_numbers = #tpu.dot_dimension_numbers<[1], [0], [0], [1], [0, 0, 1, 1], [], []>} : vector<4x4xf32>, vector<4x512xf32>, vector<4x512xf32> -> vector<4x512xf32>
    %111 = arith.addf %102, %110 : vector<4x512xf32>
    %112 = vector.broadcast %4 : vector<4x1xf32> to vector<4x512xf32>
    %113 = arith.addf %111, %112 : vector<4x512xf32>
    %cst_29 = arith.constant 0.000000e+00 : f32
    %114 = vector.broadcast %cst_29 : f32 to vector<4x512xf32>
    %115 = arith.maximumf %113, %114 : vector<4x512xf32>
    %cst_30 = arith.constant dense<0.000000e+00> : vector<4xf32>
    %116 = vector.multi_reduction <add>, %115, %cst_30 [1] : vector<4x512xf32> to vector<4xf32>
    %117 = vector.shape_cast %116 : vector<4xf32> to vector<4x1xf32>
    %cst_31 = arith.constant 0.001953125 : f32
    %118 = vector.broadcast %cst_31 : f32 to vector<4x1xf32>
    %119 = arith.mulf %117, %118 : vector<4x1xf32>
    %120 = arith.mulf %115, %115 : vector<4x512xf32>
    %cst_32 = arith.constant dense<0.000000e+00> : vector<4xf32>
    %121 = vector.multi_reduction <add>, %120, %cst_32 [1] : vector<4x512xf32> to vector<4xf32>
    %122 = vector.shape_cast %121 : vector<4xf32> to vector<4x1xf32>
    %cst_33 = arith.constant 0.001953125 : f32
    %123 = vector.broadcast %cst_33 : f32 to vector<4x1xf32>
    %124 = arith.mulf %122, %123 : vector<4x1xf32>
    %125 = arith.mulf %119, %119 : vector<4x1xf32>
    %126 = arith.subf %124, %125 : vector<4x1xf32>
    %cst_34 = arith.constant 9.99999974E-6 : f32
    %127 = vector.broadcast %cst_34 : f32 to vector<4x1xf32>
    %128 = arith.addf %126, %127 : vector<4x1xf32>
    %129 = math.rsqrt %128 : vector<4x1xf32>
    %130 = arith.mulf %6, %129 : vector<4x1xf32>
    %131 = arith.mulf %119, %130 : vector<4x1xf32>
    %132 = arith.subf %7, %131 : vector<4x1xf32>
    %133 = vector.broadcast %130 : vector<4x1xf32> to vector<4x512xf32>
    %134 = arith.mulf %115, %133 : vector<4x512xf32>
    %135 = vector.broadcast %132 : vector<4x1xf32> to vector<4x512xf32>
    %136 = arith.addf %134, %135 : vector<4x512xf32>
    %c17_i32_35 = arith.constant 17 : i32
    %137 = tpu.dynamic_rotate %136 by %c17_i32_35 dim 1 : vector<4x512xf32>, i32 -> vector<4x512xf32>
    %138 = vector.extract_strided_slice %2 {offsets = [0, 0, 0], sizes = [1, 1, 512], strides = [1, 1, 1]} : vector<9x1x512xf32> to vector<1x1x512xf32>
    %139 = vector.shape_cast %138 : vector<1x1x512xf32> to vector<1x512xf32>
    %140 = vector.broadcast %139 : vector<1x512xf32> to vector<4x512xf32>
    %141 = arith.mulf %137, %140 : vector<4x512xf32>
    %142 = vector.extract_strided_slice %9 {offsets = [0, 0, 0], sizes = [1, 4, 4], strides = [1, 1, 1]} : vector<9x4x4xf32> to vector<1x4x4xf32>
    %143 = vector.shape_cast %142 : vector<1x4x4xf32> to vector<4x4xf32>
    %cst_36 = arith.constant dense<0.000000e+00> : vector<4x512xf32>
    %144 = tpu.matmul %143, %141, %cst_36 {dimension_numbers = #tpu.dot_dimension_numbers<[1], [0], [0], [1], [0, 0, 1, 1], [], []>} : vector<4x4xf32>, vector<4x512xf32>, vector<4x512xf32> -> vector<4x512xf32>
    %c16_i32_37 = arith.constant 16 : i32
    %145 = tpu.dynamic_rotate %136 by %c16_i32_37 dim 1 : vector<4x512xf32>, i32 -> vector<4x512xf32>
    %146 = vector.extract_strided_slice %2 {offsets = [1, 0, 0], sizes = [1, 1, 512], strides = [1, 1, 1]} : vector<9x1x512xf32> to vector<1x1x512xf32>
    %147 = vector.shape_cast %146 : vector<1x1x512xf32> to vector<1x512xf32>
    %148 = vector.broadcast %147 : vector<1x512xf32> to vector<4x512xf32>
    %149 = arith.mulf %145, %148 : vector<4x512xf32>
    %150 = vector.extract_strided_slice %9 {offsets = [1, 0, 0], sizes = [1, 4, 4], strides = [1, 1, 1]} : vector<9x4x4xf32> to vector<1x4x4xf32>
    %151 = vector.shape_cast %150 : vector<1x4x4xf32> to vector<4x4xf32>
    %cst_38 = arith.constant dense<0.000000e+00> : vector<4x512xf32>
    %152 = tpu.matmul %151, %149, %cst_38 {dimension_numbers = #tpu.dot_dimension_numbers<[1], [0], [0], [1], [0, 0, 1, 1], [], []>} : vector<4x4xf32>, vector<4x512xf32>, vector<4x512xf32> -> vector<4x512xf32>
    %153 = arith.addf %144, %152 : vector<4x512xf32>
    %c15_i32_39 = arith.constant 15 : i32
    %154 = tpu.dynamic_rotate %136 by %c15_i32_39 dim 1 : vector<4x512xf32>, i32 -> vector<4x512xf32>
    %155 = vector.extract_strided_slice %2 {offsets = [2, 0, 0], sizes = [1, 1, 512], strides = [1, 1, 1]} : vector<9x1x512xf32> to vector<1x1x512xf32>
    %156 = vector.shape_cast %155 : vector<1x1x512xf32> to vector<1x512xf32>
    %157 = vector.broadcast %156 : vector<1x512xf32> to vector<4x512xf32>
    %158 = arith.mulf %154, %157 : vector<4x512xf32>
    %159 = vector.extract_strided_slice %9 {offsets = [2, 0, 0], sizes = [1, 4, 4], strides = [1, 1, 1]} : vector<9x4x4xf32> to vector<1x4x4xf32>
    %160 = vector.shape_cast %159 : vector<1x4x4xf32> to vector<4x4xf32>
    %cst_40 = arith.constant dense<0.000000e+00> : vector<4x512xf32>
    %161 = tpu.matmul %160, %158, %cst_40 {dimension_numbers = #tpu.dot_dimension_numbers<[1], [0], [0], [1], [0, 0, 1, 1], [], []>} : vector<4x4xf32>, vector<4x512xf32>, vector<4x512xf32> -> vector<4x512xf32>
    %162 = arith.addf %153, %161 : vector<4x512xf32>
    %c1_i32_41 = arith.constant 1 : i32
    %163 = tpu.dynamic_rotate %136 by %c1_i32_41 dim 1 : vector<4x512xf32>, i32 -> vector<4x512xf32>
    %164 = vector.extract_strided_slice %2 {offsets = [3, 0, 0], sizes = [1, 1, 512], strides = [1, 1, 1]} : vector<9x1x512xf32> to vector<1x1x512xf32>
    %165 = vector.shape_cast %164 : vector<1x1x512xf32> to vector<1x512xf32>
    %166 = vector.broadcast %165 : vector<1x512xf32> to vector<4x512xf32>
    %167 = arith.mulf %163, %166 : vector<4x512xf32>
    %168 = vector.extract_strided_slice %9 {offsets = [3, 0, 0], sizes = [1, 4, 4], strides = [1, 1, 1]} : vector<9x4x4xf32> to vector<1x4x4xf32>
    %169 = vector.shape_cast %168 : vector<1x4x4xf32> to vector<4x4xf32>
    %cst_42 = arith.constant dense<0.000000e+00> : vector<4x512xf32>
    %170 = tpu.matmul %169, %167, %cst_42 {dimension_numbers = #tpu.dot_dimension_numbers<[1], [0], [0], [1], [0, 0, 1, 1], [], []>} : vector<4x4xf32>, vector<4x512xf32>, vector<4x512xf32> -> vector<4x512xf32>
    %171 = arith.addf %162, %170 : vector<4x512xf32>
    %172 = vector.extract_strided_slice %9 {offsets = [4, 0, 0], sizes = [1, 4, 4], strides = [1, 1, 1]} : vector<9x4x4xf32> to vector<1x4x4xf32>
    %173 = vector.shape_cast %172 : vector<1x4x4xf32> to vector<4x4xf32>
    %cst_43 = arith.constant dense<0.000000e+00> : vector<4x512xf32>
    %174 = tpu.matmul %173, %136, %cst_43 {dimension_numbers = #tpu.dot_dimension_numbers<[1], [0], [0], [1], [0, 0, 1, 1], [], []>} : vector<4x4xf32>, vector<4x512xf32>, vector<4x512xf32> -> vector<4x512xf32>
    %175 = arith.addf %171, %174 : vector<4x512xf32>
    %c511_i32_44 = arith.constant 511 : i32
    %176 = tpu.dynamic_rotate %136 by %c511_i32_44 dim 1 : vector<4x512xf32>, i32 -> vector<4x512xf32>
    %177 = vector.extract_strided_slice %2 {offsets = [5, 0, 0], sizes = [1, 1, 512], strides = [1, 1, 1]} : vector<9x1x512xf32> to vector<1x1x512xf32>
    %178 = vector.shape_cast %177 : vector<1x1x512xf32> to vector<1x512xf32>
    %179 = vector.broadcast %178 : vector<1x512xf32> to vector<4x512xf32>
    %180 = arith.mulf %176, %179 : vector<4x512xf32>
    %181 = vector.extract_strided_slice %9 {offsets = [5, 0, 0], sizes = [1, 4, 4], strides = [1, 1, 1]} : vector<9x4x4xf32> to vector<1x4x4xf32>
    %182 = vector.shape_cast %181 : vector<1x4x4xf32> to vector<4x4xf32>
    %cst_45 = arith.constant dense<0.000000e+00> : vector<4x512xf32>
    %183 = tpu.matmul %182, %180, %cst_45 {dimension_numbers = #tpu.dot_dimension_numbers<[1], [0], [0], [1], [0, 0, 1, 1], [], []>} : vector<4x4xf32>, vector<4x512xf32>, vector<4x512xf32> -> vector<4x512xf32>
    %184 = arith.addf %175, %183 : vector<4x512xf32>
    %c497_i32_46 = arith.constant 497 : i32
    %185 = tpu.dynamic_rotate %136 by %c497_i32_46 dim 1 : vector<4x512xf32>, i32 -> vector<4x512xf32>
    %186 = vector.extract_strided_slice %2 {offsets = [6, 0, 0], sizes = [1, 1, 512], strides = [1, 1, 1]} : vector<9x1x512xf32> to vector<1x1x512xf32>
    %187 = vector.shape_cast %186 : vector<1x1x512xf32> to vector<1x512xf32>
    %188 = vector.broadcast %187 : vector<1x512xf32> to vector<4x512xf32>
    %189 = arith.mulf %185, %188 : vector<4x512xf32>
    %190 = vector.extract_strided_slice %9 {offsets = [6, 0, 0], sizes = [1, 4, 4], strides = [1, 1, 1]} : vector<9x4x4xf32> to vector<1x4x4xf32>
    %191 = vector.shape_cast %190 : vector<1x4x4xf32> to vector<4x4xf32>
    %cst_47 = arith.constant dense<0.000000e+00> : vector<4x512xf32>
    %192 = tpu.matmul %191, %189, %cst_47 {dimension_numbers = #tpu.dot_dimension_numbers<[1], [0], [0], [1], [0, 0, 1, 1], [], []>} : vector<4x4xf32>, vector<4x512xf32>, vector<4x512xf32> -> vector<4x512xf32>
    %193 = arith.addf %184, %192 : vector<4x512xf32>
    %c496_i32_48 = arith.constant 496 : i32
    %194 = tpu.dynamic_rotate %136 by %c496_i32_48 dim 1 : vector<4x512xf32>, i32 -> vector<4x512xf32>
    %195 = vector.extract_strided_slice %2 {offsets = [7, 0, 0], sizes = [1, 1, 512], strides = [1, 1, 1]} : vector<9x1x512xf32> to vector<1x1x512xf32>
    %196 = vector.shape_cast %195 : vector<1x1x512xf32> to vector<1x512xf32>
    %197 = vector.broadcast %196 : vector<1x512xf32> to vector<4x512xf32>
    %198 = arith.mulf %194, %197 : vector<4x512xf32>
    %199 = vector.extract_strided_slice %9 {offsets = [7, 0, 0], sizes = [1, 4, 4], strides = [1, 1, 1]} : vector<9x4x4xf32> to vector<1x4x4xf32>
    %200 = vector.shape_cast %199 : vector<1x4x4xf32> to vector<4x4xf32>
    %cst_49 = arith.constant dense<0.000000e+00> : vector<4x512xf32>
    %201 = tpu.matmul %200, %198, %cst_49 {dimension_numbers = #tpu.dot_dimension_numbers<[1], [0], [0], [1], [0, 0, 1, 1], [], []>} : vector<4x4xf32>, vector<4x512xf32>, vector<4x512xf32> -> vector<4x512xf32>
    %202 = arith.addf %193, %201 : vector<4x512xf32>
    %c495_i32_50 = arith.constant 495 : i32
    %203 = tpu.dynamic_rotate %136 by %c495_i32_50 dim 1 : vector<4x512xf32>, i32 -> vector<4x512xf32>
    %204 = vector.extract_strided_slice %2 {offsets = [8, 0, 0], sizes = [1, 1, 512], strides = [1, 1, 1]} : vector<9x1x512xf32> to vector<1x1x512xf32>
    %205 = vector.shape_cast %204 : vector<1x1x512xf32> to vector<1x512xf32>
    %206 = vector.broadcast %205 : vector<1x512xf32> to vector<4x512xf32>
    %207 = arith.mulf %203, %206 : vector<4x512xf32>
    %208 = vector.extract_strided_slice %9 {offsets = [8, 0, 0], sizes = [1, 4, 4], strides = [1, 1, 1]} : vector<9x4x4xf32> to vector<1x4x4xf32>
    %209 = vector.shape_cast %208 : vector<1x4x4xf32> to vector<4x4xf32>
    %cst_51 = arith.constant dense<0.000000e+00> : vector<4x512xf32>
    %210 = tpu.matmul %209, %207, %cst_51 {dimension_numbers = #tpu.dot_dimension_numbers<[1], [0], [0], [1], [0, 0, 1, 1], [], []>} : vector<4x4xf32>, vector<4x512xf32>, vector<4x512xf32> -> vector<4x512xf32>
    %211 = arith.addf %202, %210 : vector<4x512xf32>
    %212 = vector.broadcast %5 : vector<4x1xf32> to vector<4x512xf32>
    %213 = arith.addf %211, %212 : vector<4x512xf32>
    %cst_52 = arith.constant 0.000000e+00 : f32
    %214 = vector.broadcast %cst_52 : f32 to vector<4x512xf32>
    %215 = arith.maximumf %213, %214 : vector<4x512xf32>
    %cst_53 = arith.constant dense<0.000000e+00> : vector<4xf32>
    %216 = vector.multi_reduction <add>, %215, %cst_53 [1] : vector<4x512xf32> to vector<4xf32>
    %217 = vector.shape_cast %216 : vector<4xf32> to vector<4x1xf32>
    %cst_54 = arith.constant 0.001953125 : f32
    %218 = vector.broadcast %cst_54 : f32 to vector<4x1xf32>
    %219 = arith.mulf %217, %218 : vector<4x1xf32>
    %220 = arith.mulf %215, %215 : vector<4x512xf32>
    %cst_55 = arith.constant dense<0.000000e+00> : vector<4xf32>
    %221 = vector.multi_reduction <add>, %220, %cst_55 [1] : vector<4x512xf32> to vector<4xf32>
    %222 = vector.shape_cast %221 : vector<4xf32> to vector<4x1xf32>
    %cst_56 = arith.constant 0.001953125 : f32
    %223 = vector.broadcast %cst_56 : f32 to vector<4x1xf32>
    %224 = arith.mulf %222, %223 : vector<4x1xf32>
    %225 = arith.mulf %219, %219 : vector<4x1xf32>
    %226 = arith.subf %224, %225 : vector<4x1xf32>
    %cst_57 = arith.constant 9.99999974E-6 : f32
    %227 = vector.broadcast %cst_57 : f32 to vector<4x1xf32>
    %228 = arith.addf %226, %227 : vector<4x1xf32>
    %229 = math.rsqrt %228 : vector<4x1xf32>
    %230 = arith.mulf %6, %229 : vector<4x1xf32>
    %231 = arith.mulf %219, %230 : vector<4x1xf32>
    %232 = arith.subf %7, %231 : vector<4x1xf32>
    %233 = vector.broadcast %230 : vector<4x1xf32> to vector<4x512xf32>
    %234 = arith.mulf %215, %233 : vector<4x512xf32>
    %235 = vector.broadcast %232 : vector<4x1xf32> to vector<4x512xf32>
    %236 = arith.addf %234, %235 : vector<4x512xf32>
    %237 = arith.addf %36, %236 : vector<4x512xf32>
    %cst_58 = arith.constant dense<0.000000e+00> : vector<4xf32>
    %238 = vector.multi_reduction <add>, %237, %cst_58 [1] : vector<4x512xf32> to vector<4xf32>
    %239 = vector.shape_cast %238 : vector<4xf32> to vector<4x1xf32>
    %cst_59 = arith.constant 0.001953125 : f32
    %240 = vector.broadcast %cst_59 : f32 to vector<4x1xf32>
    %241 = arith.mulf %239, %240 : vector<4x1xf32>
    %242 = arith.mulf %237, %237 : vector<4x512xf32>
    %cst_60 = arith.constant dense<0.000000e+00> : vector<4xf32>
    %243 = vector.multi_reduction <add>, %242, %cst_60 [1] : vector<4x512xf32> to vector<4xf32>
    %244 = vector.shape_cast %243 : vector<4xf32> to vector<4x1xf32>
    %cst_61 = arith.constant 0.001953125 : f32
    %245 = vector.broadcast %cst_61 : f32 to vector<4x1xf32>
    %246 = arith.mulf %244, %245 : vector<4x1xf32>
    %247 = arith.mulf %241, %241 : vector<4x1xf32>
    %248 = arith.subf %246, %247 : vector<4x1xf32>
    %cst_62 = arith.constant 9.99999974E-6 : f32
    %249 = vector.broadcast %cst_62 : f32 to vector<4x1xf32>
    %250 = arith.addf %248, %249 : vector<4x1xf32>
    %251 = math.rsqrt %250 : vector<4x1xf32>
    %252 = arith.mulf %6, %251 : vector<4x1xf32>
    %253 = arith.mulf %241, %252 : vector<4x1xf32>
    %254 = arith.subf %7, %253 : vector<4x1xf32>
    %255 = vector.broadcast %252 : vector<4x1xf32> to vector<4x512xf32>
    %256 = arith.mulf %237, %255 : vector<4x512xf32>
    %257 = vector.broadcast %254 : vector<4x1xf32> to vector<4x512xf32>
    %258 = arith.addf %256, %257 : vector<4x512xf32>
    %c0_63 = arith.constant 0 : index
    %c0_64 = arith.constant 0 : index
    %259 = vector.load %arg7[%c0_63, %c0_64] : memref<4x512xf32, #tpu.memory_space<vmem>>, vector<4x512xf32>
    tpu.vector_store %arg7[%c0_63, %c0_64], %258 {strides = array<i32>} : memref<4x512xf32, #tpu.memory_space<vmem>>, vector<4x512xf32>,
    return
  }
  func.func @transform_0(%arg0: i32) -> (i32, i32) {
    %c0_i32 = arith.constant 0 : i32
    %c0_i32_0 = arith.constant 0 : i32
    %c0_i32_1 = arith.constant 0 : i32
    return %c0_i32, %c0_i32_0 : i32, i32
  }
  func.func @transform_1(%arg0: i32) -> (i32, i32) {
    %c0_i32 = arith.constant 0 : i32
    %c0_i32_0 = arith.constant 0 : i32
    %c0_i32_1 = arith.constant 0 : i32
    return %c0_i32, %c0_i32_0 : i32, i32
  }
  func.func @transform_2(%arg0: i32) -> (i32, i32, i32) {
    %c0_i32 = arith.constant 0 : i32
    %c0_i32_0 = arith.constant 0 : i32
    %c0_i32_1 = arith.constant 0 : i32
    %c0_i32_2 = arith.constant 0 : i32
    return %c0_i32, %c0_i32_0, %c0_i32_1 : i32, i32, i32
  }
  func.func @transform_3(%arg0: i32) -> (i32, i32, i32) {
    %c0_i32 = arith.constant 0 : i32
    %c0_i32_0 = arith.constant 0 : i32
    %c0_i32_1 = arith.constant 0 : i32
    %c0_i32_2 = arith.constant 0 : i32
    return %c0_i32, %c0_i32_0, %c0_i32_1 : i32, i32, i32
  }
  func.func @transform_4(%arg0: i32) -> (i32, i32) {
    %c0_i32 = arith.constant 0 : i32
    %c0_i32_0 = arith.constant 0 : i32
    %c0_i32_1 = arith.constant 0 : i32
    return %c0_i32, %c0_i32_0 : i32, i32
  }
  func.func @transform_5(%arg0: i32) -> (i32, i32, i32) {
    %c0_i32 = arith.constant 0 : i32
    %c0_i32_0 = arith.constant 0 : i32
    %c0_i32_1 = arith.constant 0 : i32
    %c0_i32_2 = arith.constant 0 : i32
    return %c0_i32, %c0_i32_0, %c0_i32_1 : i32, i32, i32
  }
  func.func @transform_6(%arg0: i32) -> (i32, i32) {
    %c0_i32 = arith.constant 0 : i32
    %c0_i32_0 = arith.constant 0 : i32
    %c0_i32_1 = arith.constant 0 : i32
    return %c0_i32, %c0_i32_0 : i32, i32
  }
}

</mosaic_0001>

<llo_original>
// kernel: resnet1_conv2d_block_forward.1
$region0: #{resnet1_conv2d_block_forward.1}
  #allocation0 [shape = 'u32[]', space=smem, size = 0x4, offset = 0x4, fixed_abs, tag = 'smem constant byte address 0x4 - core index']
  #allocation1 [shape = 'u32[72,128]{1,0:T(1,128)}', space=vmem, size = 0x9000, scoped, tag = 'internal scratch']
  %s0 = inlined_call_operand.vmem [shape: f32[4,512], index: 0, kind: input, shape index: {}]
  %s1 = inlined_call_operand.vmem [shape: f32[4,4], index: 1, kind: input, shape index: {}]
  %s2 = inlined_call_operand.vmem [shape: f32[9,4,4], index: 2, kind: input, shape index: {}]
  %s3 = inlined_call_operand.vmem [shape: f32[9,4,4], index: 3, kind: input, shape index: {}]
  %s4 = inlined_call_operand.vmem [shape: f32[4,5], index: 4, kind: input, shape index: {}]
  %s5 = inlined_call_operand.vmem [shape: f32[9,1,512], index: 5, kind: input, shape index: {}]
  %s6 = inlined_call_operand.vmem [shape: f32[4,512], index: 6, kind: output, shape index: {}]
  %s7 = sld [smem:[#allocation0]]
  $region34: #{resnet1_conv2d_block_forward.1} parent=0
    _
  %s9 = ssub.s32 1, %s7
  %s10 = scalar_select 0, %s9, %s7
  // Predicated region
  $region2: #{resnet1_conv2d_block_forward.1} parent=0 // pred_check
    _
  $region3: #{resnet1_conv2d_block_forward.1} parent=0 // pred_check_branch
    %12 = sbr.rel (0) target = $region5
  $region4: #{resnet1_conv2d_block_forward.1} parent=0 // pred_region
    _
  $region5: #{resnet1_conv2d_block_forward.1} parent=0 // pred_fallthru
    _
  // Predicated region
  $region6: #{resnet1_conv2d_block_forward.1} parent=0 // pred_check
    _
  $region7: #{resnet1_conv2d_block_forward.1} parent=0 // pred_check_branch
    %14 = sbr.rel (0) target = $region9
  $region8: #{resnet1_conv2d_block_forward.1} parent=0 // pred_region
    _
  $region9: #{resnet1_conv2d_block_forward.1} parent=0 // pred_fallthru
    _
  // Predicated region
  $region10: #{resnet1_conv2d_block_forward.1} parent=0 // pred_check
    _
  $region11: #{resnet1_conv2d_block_forward.1} parent=0 // pred_check_branch
    %16 = sbr.rel (0) target = $region13
  $region12: #{resnet1_conv2d_block_forward.1} parent=0 // pred_region
    _
  $region13: #{resnet1_conv2d_block_forward.1} parent=0 // pred_fallthru
    _
  // Predicated region
  $region14: #{resnet1_conv2d_block_forward.1} parent=0 // pred_check
    _
  $region15: #{resnet1_conv2d_block_forward.1} parent=0 // pred_check_branch
    %18 = sbr.rel (0) target = $region17
  $region16: #{resnet1_conv2d_block_forward.1} parent=0 // pred_region
    _
  $region17: #{resnet1_conv2d_block_forward.1} parent=0 // pred_fallthru
    _
  // Predicated region
  $region18: #{resnet1_conv2d_block_forward.1} parent=0 // pred_check
    _
  $region19: #{resnet1_conv2d_block_forward.1} parent=0 // pred_check_branch
    %20 = sbr.rel (0) target = $region21
  $region20: #{resnet1_conv2d_block_forward.1} parent=0 // pred_region
    _
  $region21: #{resnet1_conv2d_block_forward.1} parent=0 // pred_fallthru
    _
  // Predicated region
  $region22: #{resnet1_conv2d_block_forward.1} parent=0 // pred_check
    _
  $region23: #{resnet1_conv2d_block_forward.1} parent=0 // pred_check_branch
    %22 = sbr.rel (0) target = $region25
  $region24: #{resnet1_conv2d_block_forward.1} parent=0 // pred_region
    _
  $region25: #{resnet1_conv2d_block_forward.1} parent=0 // pred_fallthru
    _
  %v23 = vld [vmem:[%s0] sm:$0xff]
  %v24 = vld [vmem:[%s0 + $0x8] sm:$0xff]
  %v25 = vld [vmem:[%s4] sm:$0xf]
  %v26 = vld [vmem:[%s5] sm:$0xf]
  %v27 = vld [vmem:[%s5 + $0x4] sm:$0xf]
  %v28 = vld [vmem:[%s5 + $0x8] sm:$0xf]
  %v29 = vld [vmem:[%s5 + $0xc] sm:$0xf]
  %v30 = vld [vmem:[%s5 + $0x14] sm:$0xf]
  %v31 = vld [vmem:[%s5 + $0x18] sm:$0xf]
  %v32 = vld [vmem:[%s5 + $0x1c] sm:$0xf]
  %v33 = vld [vmem:[%s5 + $0x20] sm:$0xf]
  %v34 = vld [vmem:[%s2] sm:$0xf]
  %v35 = vld [vmem:[%s2 + $0x4] sm:$0xf]
  %v36 = vld [vmem:[%s2 + $0x8] sm:$0xf]
  %v37 = vld [vmem:[%s2 + $0xc] sm:$0xf]
  %v38 = vld [vmem:[%s2 + $0x10] sm:$0xf]
  %v39 = vld [vmem:[%s2 + $0x14] sm:$0xf]
  %v40 = vld [vmem:[%s2 + $0x18] sm:$0xf]
  %v41 = vld [vmem:[%s2 + $0x1c] sm:$0xf]
  %v42 = vld [vmem:[%s2 + $0x20] sm:$0xf]
  %v43 = vld [vmem:[%s3] sm:$0xf]
  %v44 = vld [vmem:[%s3 + $0x4] sm:$0xf]
  %v45 = vld [vmem:[%s3 + $0x8] sm:$0xf]
  %v46 = vld [vmem:[%s3 + $0xc] sm:$0xf]
  %v47 = vld [vmem:[%s3 + $0x10] sm:$0xf]
  %v48 = vld [vmem:[%s3 + $0x14] sm:$0xf]
  %v49 = vld [vmem:[%s3 + $0x18] sm:$0xf]
  %v50 = vld [vmem:[%s3 + $0x1c] sm:$0xf]
  %v51 = vld [vmem:[%s3 + $0x20] sm:$0xf]
  %v52 = vld [vmem:[%s1] sm:$0xf]
  %54 = vset.pattern.permute.xlu0 0
  %55 = vperm.xlu0 %54, %v25
  %v56 = vpop.permute.xlu0 %55
  %60 = vst [vmem:[#allocation1] ss:$2 sm:$0xff] %v23
  %s61 = scalar_lea.vmem [#allocation1], 16
  %62 = vst [vmem:[%s61] ss:$2 sm:$0xff] %v24
  %v63 = vld.sshfl [vmem:[#allocation1] sm:$0xff pattern:$0x75316420]
  %v64 = vld.sshfl [vmem:[#allocation1 + $0x8] sm:$0xff pattern:$0x75316420]
  %v65 = vld.sshfl [vmem:[#allocation1 + $0x10] sm:$0xff pattern:$0x75316420]
  %v66 = vld.sshfl [vmem:[#allocation1 + $0x18] sm:$0xff pattern:$0x75316420]
  %vm67 = vcmask 31744
  %v69 = vsel %vm67, %v52, 0
  %vm71 = vcmask 1043456
  %v72 = vsel %vm71, %v63, 0
  %v74 = vsel %vm71, %v64, 0
  %v76 = vsel %vm71, %v65, 0
  %v78 = vsel %vm71, %v66, 0
  %80 = vmatpush.msra.mxu0 0.0
  %81 = vmatpush.msra.mxu0 0.0
  %82 = vmatpush.msra.mxu0 0.0
  %83 = vmatpush.msra.mxu0 0.0
  %84 = vmatpush.msra.mxu0 0.0
  %85 = vmatpush.msra.mxu0 0.0
  %86 = vmatpush.msra.mxu0 0.0
  %87 = vmatpush.msra.mxu0 0.0
  %88 = vmatpush.msra.mxu0 0.0
  %89 = vmatpush.msra.mxu0 0.0
  %90 = vmatpush.msra.mxu0 0.0
  %91 = vmatpush.msra.mxu0 0.0
  %92 = vmatpush.msra.mxu0 0.0
  %93 = vmatpush.msra.mxu0 0.0
  %94 = vmatpush.msra.mxu0 0.0
  %95 = vmatpush.msra.mxu0 %v72
  %96 = vmatmul.f32.gmra.mxu0 %v69
  %v97 = vpop.f32.mrf.mxu0
  %v98 = vadd.f32 %v56, %v97
  %99 = vdwg.mxu0
  %100 = vmatpush.msra.mxu0 0.0
  %101 = vmatpush.msra.mxu0 0.0
  %102 = vmatpush.msra.mxu0 0.0
  %103 = vmatpush.msra.mxu0 0.0
  %104 = vmatpush.msra.mxu0 0.0
  %105 = vmatpush.msra.mxu0 0.0
  %106 = vmatpush.msra.mxu0 0.0
  %107 = vmatpush.msra.mxu0 0.0
  %108 = vmatpush.msra.mxu0 0.0
  %109 = vmatpush.msra.mxu0 0.0
  %110 = vmatpush.msra.mxu0 0.0
  %111 = vmatpush.msra.mxu0 0.0
  %112 = vmatpush.msra.mxu0 0.0
  %113 = vmatpush.msra.mxu0 0.0
  %114 = vmatpush.msra.mxu0 0.0
  %115 = vmatpush.msra.mxu0 %v74
  %116 = vmatmul.f32.gmra.mxu0 %v69
  %v117 = vpop.f32.mrf.mxu0
  %v118 = vadd.f32 %v56, %v117
  %119 = vdwg.mxu0
  %120 = vmatpush.msra.mxu0 0.0
  %121 = vmatpush.msra.mxu0 0.0
  %122 = vmatpush.msra.mxu0 0.0
  %123 = vmatpush.msra.mxu0 0.0
  %124 = vmatpush.msra.mxu0 0.0
  %125 = vmatpush.msra.mxu0 0.0
  %126 = vmatpush.msra.mxu0 0.0
  %127 = vmatpush.msra.mxu0 0.0
  %128 = vmatpush.msra.mxu0 0.0
  %129 = vmatpush.msra.mxu0 0.0
  %130 = vmatpush.msra.mxu0 0.0
  %131 = vmatpush.msra.mxu0 0.0
  %132 = vmatpush.msra.mxu0 0.0
  %133 = vmatpush.msra.mxu0 0.0
  %134 = vmatpush.msra.mxu0 0.0
  %135 = vmatpush.msra.mxu0 %v76
  %136 = vmatmul.f32.gmra.mxu0 %v69
  %v137 = vpop.f32.mrf.mxu0
  %v138 = vadd.f32 %v56, %v137
  %139 = vdwg.mxu0
  %140 = vmatpush.msra.mxu0 0.0
  %141 = vmatpush.msra.mxu0 0.0
  %142 = vmatpush.msra.mxu0 0.0
  %143 = vmatpush.msra.mxu0 0.0
  %144 = vmatpush.msra.mxu0 0.0
  %145 = vmatpush.msra.mxu0 0.0
  %146 = vmatpush.msra.mxu0 0.0
  %147 = vmatpush.msra.mxu0 0.0
  %148 = vmatpush.msra.mxu0 0.0
  %149 = vmatpush.msra.mxu0 0.0
  %150 = vmatpush.msra.mxu0 0.0
  %151 = vmatpush.msra.mxu0 0.0
  %152 = vmatpush.msra.mxu0 0.0
  %153 = vmatpush.msra.mxu0 0.0
  %154 = vmatpush.msra.mxu0 0.0
  %155 = vmatpush.msra.mxu0 %v78
  %156 = vmatmul.f32.gmra.mxu0 %v69
  %v157 = vpop.f32.mrf.mxu0
  %v158 = vadd.f32 %v56, %v157
  %159 = vdwg.mxu0
  %v160 = vmax.f32 %v98, 0.0
  %v161 = vmax.f32 %v118, 0.0
  %v162 = vmax.f32 %v138, 0.0
  %v163 = vmax.f32 %v158, 0.0
  %v164 = vsel %vm71, %v160, 0.0
  %v165 = vsel %vm71, %v161, 0.0
  %v166 = vadd.f32 %v164, %v165
  %v167 = vsel %vm71, %v162, 0.0
  %v168 = vadd.f32 %v166, %v167
  %v169 = vsel %vm71, %v163, 0.0
  %v170 = vadd.f32 %v168, %v169
  %171 = vadd.xlane.f32.xlu0 %v170
  %v172 = vpop.xlane.xlu0 %171
  %v173 = vmul.f32 %v172, 0.001953125
  %v174 = vmul.f32 %v160, %v160
  %v175 = vmul.f32 %v161, %v161
  %v176 = vmul.f32 %v162, %v162
  %v177 = vmul.f32 %v163, %v163
  %v178 = vsel %vm71, %v174, 0.0
  %v179 = vsel %vm71, %v175, 0.0
  %v180 = vadd.f32 %v178, %v179
  %v181 = vsel %vm71, %v176, 0.0
  %v182 = vadd.f32 %v180, %v181
  %v183 = vsel %vm71, %v177, 0.0
  %v184 = vadd.f32 %v182, %v183
  %185 = vadd.xlane.f32.xlu0 %v184
  %v186 = vpop.xlane.xlu0 %185
  %v187 = vmul.f32 %v186, 0.001953125
  %v188 = vmul.f32 %v173, %v173
  %v189 = vsub.f32 %v187, %v188
  %v190 = vadd.f32 %v189, 1e-05
  %v191 = vrsqrt.pop %v190
  %v192 = vmul.f32 %v191, %v190
  %v193 = vmul.f32 %v192, %v191
  %v194 = vmul.f32 0.5, %v193
  %v195 = vsub.f32 1.5, %v194
  %v196 = vmul.f32 %v191, %v195
  %vm197 = vweird.f32 %v190
  %vm198 = vweird.f32 %v191
  %vm199 = vmor %vm197, %vm198
  %v200 = vsel %vm199, %v191, %v196
  %v201 = vmul.f32 %v25, %v200
  %v202 = vmul.f32 %v173, %v201
  %204 = vrot.lane.b32.xlu0 %v202, 1
  %v205 = vpop.permute.xlu0 %204
  %v207 = vsub.f32 %v25, %v205
  %209 = vset.pattern.permute.xlu0 3
  %210 = vperm.xlu0 %209, %v201
  %v211 = vpop.permute.xlu0 %210
  %v213 = vmul.f32 %v160, %v211
  %v214 = vmul.f32 %v161, %v211
  %v215 = vmul.f32 %v162, %v211
  %v216 = vmul.f32 %v163, %v211
  %218 = vset.pattern.permute.xlu0 4
  %219 = vperm.xlu0 %218, %v207
  %v220 = vpop.permute.xlu0 %219
  %v222 = vadd.f32 %v213, %v220
  %v223 = vadd.f32 %v214, %v220
  %v224 = vadd.f32 %v215, %v220
  %v225 = vadd.f32 %v216, %v220
  %226 = vst [vmem:[#allocation1] ss:$2 sm:$0xff] %v23
  %s227 = scalar_lea.vmem [#allocation1], 16
  %228 = vst [vmem:[%s227] ss:$2 sm:$0xff] %v24
  %v229 = vld.sshfl [vmem:[#allocation1] sm:$0xff pattern:$0x75316420]
  %v230 = vld.sshfl [vmem:[#allocation1 + $0x8] sm:$0xff pattern:$0x75316420]
  %v231 = vld.sshfl [vmem:[#allocation1 + $0x10] sm:$0xff pattern:$0x75316420]
  %v232 = vld.sshfl [vmem:[#allocation1 + $0x18] sm:$0xff pattern:$0x75316420]
  %237 = vrot.lane.b32.xlu0 %v229, 17
  %v238 = vpop.permute.xlu0 %237
  %239 = vrot.lane.b32.xlu0 %v230, 17
  %v240 = vpop.permute.xlu0 %239
  %241 = vrot.lane.b32.xlu0 %v231, 17
  %v242 = vpop.permute.xlu0 %241
  %243 = vrot.lane.b32.xlu0 %v232, 17
  %v244 = vpop.permute.xlu0 %243
  %v245 = vlaneseq
  %v246 = vand.u32 %v245, 127
  %vm247 = vcmp.lt.s32.totalorder %v246, 17
  %v248 = vsel %vm247, %v242, %v244
  %v249 = vsel %vm247, %v240, %v242
  %v250 = vsel %vm247, %v238, %v240
  %v251 = vsel %vm247, %v244, %v238
  %v253 = vperm.slane %v26, 0
  %v254 = vperm.slane %v26, 1
  %v255 = vperm.slane %v26, 2
  %v256 = vperm.slane %v26, 3
  %v261 = vmul.f32 %v251, %v253
  %v262 = vmul.f32 %v250, %v254
  %v263 = vmul.f32 %v249, %v255
  %v264 = vmul.f32 %v248, %v256
  %265 = vst [vmem:[#allocation1] ss:$2 sm:$0xff] %v23
  %s266 = scalar_lea.vmem [#allocation1], 16
  %267 = vst [vmem:[%s266] ss:$2 sm:$0xff] %v24
  %v268 = vld.sshfl [vmem:[#allocation1] sm:$0xff pattern:$0x75316420]
  %v269 = vld.sshfl [vmem:[#allocation1 + $0x8] sm:$0xff pattern:$0x75316420]
  %v270 = vld.sshfl [vmem:[#allocation1 + $0x10] sm:$0xff pattern:$0x75316420]
  %v271 = vld.sshfl [vmem:[#allocation1 + $0x18] sm:$0xff pattern:$0x75316420]
  %276 = vrot.lane.b32.xlu0 %v268, 16
  %v277 = vpop.permute.xlu0 %276
  %278 = vrot.lane.b32.xlu0 %v269, 16
  %v279 = vpop.permute.xlu0 %278
  %280 = vrot.lane.b32.xlu0 %v270, 16
  %v281 = vpop.permute.xlu0 %280
  %282 = vrot.lane.b32.xlu0 %v271, 16
  %v283 = vpop.permute.xlu0 %282
  %vm284 = vcmp.lt.s32.totalorder %v246, 16
  %v285 = vsel %vm284, %v281, %v283
  %v286 = vsel %vm284, %v279, %v281
  %v287 = vsel %vm284, %v277, %v279
  %v288 = vsel %vm284, %v283, %v277
  %v290 = vperm.slane %v27, 0
  %v291 = vperm.slane %v27, 1
  %v292 = vperm.slane %v27, 2
  %v293 = vperm.slane %v27, 3
  %v298 = vmul.f32 %v288, %v290
  %v299 = vmul.f32 %v287, %v291
  %v300 = vmul.f32 %v286, %v292
  %v301 = vmul.f32 %v285, %v293
  %v303 = vsel %vm67, %v35, 0
  %v306 = vsel %vm71, %v298, 0
  %v309 = vsel %vm71, %v299, 0
  %v312 = vsel %vm71, %v300, 0
  %v315 = vsel %vm71, %v301, 0
  %317 = vmatpush.msra.mxu0 0.0
  %318 = vmatpush.msra.mxu0 0.0
  %319 = vmatpush.msra.mxu0 0.0
  %320 = vmatpush.msra.mxu0 0.0
  %321 = vmatpush.msra.mxu0 0.0
  %322 = vmatpush.msra.mxu0 0.0
  %323 = vmatpush.msra.mxu0 0.0
  %324 = vmatpush.msra.mxu0 0.0
  %325 = vmatpush.msra.mxu0 0.0
  %326 = vmatpush.msra.mxu0 0.0
  %327 = vmatpush.msra.mxu0 0.0
  %328 = vmatpush.msra.mxu0 0.0
  %329 = vmatpush.msra.mxu0 0.0
  %330 = vmatpush.msra.mxu0 0.0
  %331 = vmatpush.msra.mxu0 0.0
  %332 = vmatpush.msra.mxu0 %v306
  %333 = vmatmul.f32.gmra.mxu0 %v303
  %v334 = vpop.f32.mrf.mxu0
  %v335 = vadd.f32 0.0, %v334
  %336 = vdwg.mxu0
  %337 = vmatpush.msra.mxu0 0.0
  %338 = vmatpush.msra.mxu0 0.0
  %339 = vmatpush.msra.mxu0 0.0
  %340 = vmatpush.msra.mxu0 0.0
  %341 = vmatpush.msra.mxu0 0.0
  %342 = vmatpush.msra.mxu0 0.0
  %343 = vmatpush.msra.mxu0 0.0
  %344 = vmatpush.msra.mxu0 0.0
  %345 = vmatpush.msra.mxu0 0.0
  %346 = vmatpush.msra.mxu0 0.0
  %347 = vmatpush.msra.mxu0 0.0
  %348 = vmatpush.msra.mxu0 0.0
  %349 = vmatpush.msra.mxu0 0.0
  %350 = vmatpush.msra.mxu0 0.0
  %351 = vmatpush.msra.mxu0 0.0
  %352 = vmatpush.msra.mxu0 %v309
  %353 = vmatmul.f32.gmra.mxu0 %v303
  %v354 = vpop.f32.mrf.mxu0
  %v355 = vadd.f32 0.0, %v354
  %356 = vdwg.mxu0
  %357 = vmatpush.msra.mxu0 0.0
  %358 = vmatpush.msra.mxu0 0.0
  %359 = vmatpush.msra.mxu0 0.0
  %360 = vmatpush.msra.mxu0 0.0
  %361 = vmatpush.msra.mxu0 0.0
  %362 = vmatpush.msra.mxu0 0.0
  %363 = vmatpush.msra.mxu0 0.0
  %364 = vmatpush.msra.mxu0 0.0
  %365 = vmatpush.msra.mxu0 0.0
  %366 = vmatpush.msra.mxu0 0.0
  %367 = vmatpush.msra.mxu0 0.0
  %368 = vmatpush.msra.mxu0 0.0
  %369 = vmatpush.msra.mxu0 0.0
  %370 = vmatpush.msra.mxu0 0.0
  %371 = vmatpush.msra.mxu0 0.0
  %372 = vmatpush.msra.mxu0 %v312
  %373 = vmatmul.f32.gmra.mxu0 %v303
  %v374 = vpop.f32.mrf.mxu0
  %v375 = vadd.f32 0.0, %v374
  %376 = vdwg.mxu0
  %377 = vmatpush.msra.mxu0 0.0
  %378 = vmatpush.msra.mxu0 0.0
  %379 = vmatpush.msra.mxu0 0.0
  %380 = vmatpush.msra.mxu0 0.0
  %381 = vmatpush.msra.mxu0 0.0
  %382 = vmatpush.msra.mxu0 0.0
  %383 = vmatpush.msra.mxu0 0.0
  %384 = vmatpush.msra.mxu0 0.0
  %385 = vmatpush.msra.mxu0 0.0
  %386 = vmatpush.msra.mxu0 0.0
  %387 = vmatpush.msra.mxu0 0.0
  %388 = vmatpush.msra.mxu0 0.0
  %389 = vmatpush.msra.mxu0 0.0
  %390 = vmatpush.msra.mxu0 0.0
  %391 = vmatpush.msra.mxu0 0.0
  %392 = vmatpush.msra.mxu0 %v315
  %393 = vmatmul.f32.gmra.mxu0 %v303
  %v394 = vpop.f32.mrf.mxu0
  %v395 = vadd.f32 0.0, %v394
  %396 = vdwg.mxu0
  %v398 = vsel %vm67, %v34, 0
  %v401 = vsel %vm71, %v261, 0
  %v404 = vsel %vm71, %v262, 0
  %v407 = vsel %vm71, %v263, 0
  %v410 = vsel %vm71, %v264, 0
  %412 = vmatpush.msra.mxu0 0.0
  %413 = vmatpush.msra.mxu0 0.0
  %414 = vmatpush.msra.mxu0 0.0
  %415 = vmatpush.msra.mxu0 0.0
  %416 = vmatpush.msra.mxu0 0.0
  %417 = vmatpush.msra.mxu0 0.0
  %418 = vmatpush.msra.mxu0 0.0
  %419 = vmatpush.msra.mxu0 0.0
  %420 = vmatpush.msra.mxu0 0.0
  %421 = vmatpush.msra.mxu0 0.0
  %422 = vmatpush.msra.mxu0 0.0
  %423 = vmatpush.msra.mxu0 0.0
  %424 = vmatpush.msra.mxu0 0.0
  %425 = vmatpush.msra.mxu0 0.0
  %426 = vmatpush.msra.mxu0 0.0
  %427 = vmatpush.msra.mxu0 %v401
  %428 = vmatmul.f32.gmra.mxu0 %v398
  %v429 = vpop.f32.mrf.mxu0
  %v430 = vadd.f32 %v335, %v429
  %431 = vdwg.mxu0
  %432 = vmatpush.msra.mxu0 0.0
  %433 = vmatpush.msra.mxu0 0.0
  %434 = vmatpush.msra.mxu0 0.0
  %435 = vmatpush.msra.mxu0 0.0
  %436 = vmatpush.msra.mxu0 0.0
  %437 = vmatpush.msra.mxu0 0.0
  %438 = vmatpush.msra.mxu0 0.0
  %439 = vmatpush.msra.mxu0 0.0
  %440 = vmatpush.msra.mxu0 0.0
  %441 = vmatpush.msra.mxu0 0.0
  %442 = vmatpush.msra.mxu0 0.0
  %443 = vmatpush.msra.mxu0 0.0
  %444 = vmatpush.msra.mxu0 0.0
  %445 = vmatpush.msra.mxu0 0.0
  %446 = vmatpush.msra.mxu0 0.0
  %447 = vmatpush.msra.mxu0 %v404
  %448 = vmatmul.f32.gmra.mxu0 %v398
  %v449 = vpop.f32.mrf.mxu0
  %v450 = vadd.f32 %v355, %v449
  %451 = vdwg.mxu0
  %452 = vmatpush.msra.mxu0 0.0
  %453 = vmatpush.msra.mxu0 0.0
  %454 = vmatpush.msra.mxu0 0.0
  %455 = vmatpush.msra.mxu0 0.0
  %456 = vmatpush.msra.mxu0 0.0
  %457 = vmatpush.msra.mxu0 0.0
  %458 = vmatpush.msra.mxu0 0.0
  %459 = vmatpush.msra.mxu0 0.0
  %460 = vmatpush.msra.mxu0 0.0
  %461 = vmatpush.msra.mxu0 0.0
  %462 = vmatpush.msra.mxu0 0.0
  %463 = vmatpush.msra.mxu0 0.0
  %464 = vmatpush.msra.mxu0 0.0
  %465 = vmatpush.msra.mxu0 0.0
  %466 = vmatpush.msra.mxu0 0.0
  %467 = vmatpush.msra.mxu0 %v407
  %468 = vmatmul.f32.gmra.mxu0 %v398
  %v469 = vpop.f32.mrf.mxu0
  %v470 = vadd.f32 %v375, %v469
  %471 = vdwg.mxu0
  %472 = vmatpush.msra.mxu0 0.0
  %473 = vmatpush.msra.mxu0 0.0
  %474 = vmatpush.msra.mxu0 0.0
  %475 = vmatpush.msra.mxu0 0.0
  %476 = vmatpush.msra.mxu0 0.0
  %477 = vmatpush.msra.mxu0 0.0
  %478 = vmatpush.msra.mxu0 0.0
  %479 = vmatpush.msra.mxu0 0.0
  %480 = vmatpush.msra.mxu0 0.0
  %481 = vmatpush.msra.mxu0 0.0
  %482 = vmatpush.msra.mxu0 0.0
  %483 = vmatpush.msra.mxu0 0.0
  %484 = vmatpush.msra.mxu0 0.0
  %485 = vmatpush.msra.mxu0 0.0
  %486 = vmatpush.msra.mxu0 0.0
  %487 = vmatpush.msra.mxu0 %v410
  %488 = vmatmul.f32.gmra.mxu0 %v398
  %v489 = vpop.f32.mrf.mxu0
  %v490 = vadd.f32 %v395, %v489
  %491 = vdwg.mxu0
  %492 = vst [vmem:[#allocation1] ss:$2 sm:$0xff] %v23
  %s493 = scalar_lea.vmem [#allocation1], 16
  %494 = vst [vmem:[%s493] ss:$2 sm:$0xff] %v24
  %v495 = vld.sshfl [vmem:[#allocation1] sm:$0xff pattern:$0x75316420]
  %v496 = vld.sshfl [vmem:[#allocation1 + $0x8] sm:$0xff pattern:$0x75316420]
  %v497 = vld.sshfl [vmem:[#allocation1 + $0x10] sm:$0xff pattern:$0x75316420]
  %v498 = vld.sshfl [vmem:[#allocation1 + $0x18] sm:$0xff pattern:$0x75316420]
  %503 = vrot.lane.b32.xlu0 %v495, 15
  %v504 = vpop.permute.xlu0 %503
  %505 = vrot.lane.b32.xlu0 %v496, 15
  %v506 = vpop.permute.xlu0 %505
  %507 = vrot.lane.b32.xlu0 %v497, 15
  %v508 = vpop.permute.xlu0 %507
  %509 = vrot.lane.b32.xlu0 %v498, 15
  %v510 = vpop.permute.xlu0 %509
  %vm511 = vcmp.lt.s32.totalorder %v246, 15
  %v512 = vsel %vm511, %v508, %v510
  %v513 = vsel %vm511, %v506, %v508
  %v514 = vsel %vm511, %v504, %v506
  %v515 = vsel %vm511, %v510, %v504
  %v517 = vperm.slane %v28, 0
  %v518 = vperm.slane %v28, 1
  %v519 = vperm.slane %v28, 2
  %v520 = vperm.slane %v28, 3
  %v525 = vmul.f32 %v515, %v517
  %v526 = vmul.f32 %v514, %v518
  %v527 = vmul.f32 %v513, %v519
  %v528 = vmul.f32 %v512, %v520
  %v530 = vsel %vm67, %v36, 0
  %v533 = vsel %vm71, %v525, 0
  %v536 = vsel %vm71, %v526, 0
  %v539 = vsel %vm71, %v527, 0
  %v542 = vsel %vm71, %v528, 0
  %544 = vmatpush.msra.mxu0 0.0
  %545 = vmatpush.msra.mxu0 0.0
  %546 = vmatpush.msra.mxu0 0.0
  %547 = vmatpush.msra.mxu0 0.0
  %548 = vmatpush.msra.mxu0 0.0
  %549 = vmatpush.msra.mxu0 0.0
  %550 = vmatpush.msra.mxu0 0.0
  %551 = vmatpush.msra.mxu0 0.0
  %552 = vmatpush.msra.mxu0 0.0
  %553 = vmatpush.msra.mxu0 0.0
  %554 = vmatpush.msra.mxu0 0.0
  %555 = vmatpush.msra.mxu0 0.0
  %556 = vmatpush.msra.mxu0 0.0
  %557 = vmatpush.msra.mxu0 0.0
  %558 = vmatpush.msra.mxu0 0.0
  %559 = vmatpush.msra.mxu0 %v533
  %560 = vmatmul.f32.gmra.mxu0 %v530
  %v561 = vpop.f32.mrf.mxu0
  %v562 = vadd.f32 0.0, %v561
  %563 = vdwg.mxu0
  %564 = vmatpush.msra.mxu0 0.0
  %565 = vmatpush.msra.mxu0 0.0
  %566 = vmatpush.msra.mxu0 0.0
  %567 = vmatpush.msra.mxu0 0.0
  %568 = vmatpush.msra.mxu0 0.0
  %569 = vmatpush.msra.mxu0 0.0
  %570 = vmatpush.msra.mxu0 0.0
  %571 = vmatpush.msra.mxu0 0.0
  %572 = vmatpush.msra.mxu0 0.0
  %573 = vmatpush.msra.mxu0 0.0
  %574 = vmatpush.msra.mxu0 0.0
  %575 = vmatpush.msra.mxu0 0.0
  %576 = vmatpush.msra.mxu0 0.0
  %577 = vmatpush.msra.mxu0 0.0
  %578 = vmatpush.msra.mxu0 0.0
  %579 = vmatpush.msra.mxu0 %v536
  %580 = vmatmul.f32.gmra.mxu0 %v530
  %v581 = vpop.f32.mrf.mxu0
  %v582 = vadd.f32 0.0, %v581
  %583 = vdwg.mxu0
  %584 = vmatpush.msra.mxu0 0.0
  %585 = vmatpush.msra.mxu0 0.0
  %586 = vmatpush.msra.mxu0 0.0
  %587 = vmatpush.msra.mxu0 0.0
  %588 = vmatpush.msra.mxu0 0.0
  %589 = vmatpush.msra.mxu0 0.0
  %590 = vmatpush.msra.mxu0 0.0
  %591 = vmatpush.msra.mxu0 0.0
  %592 = vmatpush.msra.mxu0 0.0
  %593 = vmatpush.msra.mxu0 0.0
  %594 = vmatpush.msra.mxu0 0.0
  %595 = vmatpush.msra.mxu0 0.0
  %596 = vmatpush.msra.mxu0 0.0
  %597 = vmatpush.msra.mxu0 0.0
  %598 = vmatpush.msra.mxu0 0.0
  %599 = vmatpush.msra.mxu0 %v539
  %600 = vmatmul.f32.gmra.mxu0 %v530
  %v601 = vpop.f32.mrf.mxu0
  %v602 = vadd.f32 0.0, %v601
  %603 = vdwg.mxu0
  %604 = vmatpush.msra.mxu0 0.0
  %605 = vmatpush.msra.mxu0 0.0
  %606 = vmatpush.msra.mxu0 0.0
  %607 = vmatpush.msra.mxu0 0.0
  %608 = vmatpush.msra.mxu0 0.0
  %609 = vmatpush.msra.mxu0 0.0
  %610 = vmatpush.msra.mxu0 0.0
  %611 = vmatpush.msra.mxu0 0.0
  %612 = vmatpush.msra.mxu0 0.0
  %613 = vmatpush.msra.mxu0 0.0
  %614 = vmatpush.msra.mxu0 0.0
  %615 = vmatpush.msra.mxu0 0.0
  %616 = vmatpush.msra.mxu0 0.0
  %617 = vmatpush.msra.mxu0 0.0
  %618 = vmatpush.msra.mxu0 0.0
  %619 = vmatpush.msra.mxu0 %v542
  %620 = vmatmul.f32.gmra.mxu0 %v530
  %v621 = vpop.f32.mrf.mxu0
  %v622 = vadd.f32 0.0, %v621
  %623 = vdwg.mxu0
  %v624 = vadd.f32 %v430, %v562
  %v625 = vadd.f32 %v450, %v582
  %v626 = vadd.f32 %v470, %v602
  %v627 = vadd.f32 %v490, %v622
  %628 = vst [vmem:[#allocation1] ss:$2 sm:$0xff] %v23
  %s629 = scalar_lea.vmem [#allocation1], 16
  %630 = vst [vmem:[%s629] ss:$2 sm:$0xff] %v24
  %v631 = vld.sshfl [vmem:[#allocation1] sm:$0xff pattern:$0x75316420]
  %v632 = vld.sshfl [vmem:[#allocation1 + $0x8] sm:$0xff pattern:$0x75316420]
  %v633 = vld.sshfl [vmem:[#allocation1 + $0x10] sm:$0xff pattern:$0x75316420]
  %v634 = vld.sshfl [vmem:[#allocation1 + $0x18] sm:$0xff pattern:$0x75316420]
  %639 = vrot.lane.b32.xlu0 %v631, 1
  %v640 = vpop.permute.xlu0 %639
  %641 = vrot.lane.b32.xlu0 %v632, 1
  %v642 = vpop.permute.xlu0 %641
  %643 = vrot.lane.b32.xlu0 %v633, 1
  %v644 = vpop.permute.xlu0 %643
  %645 = vrot.lane.b32.xlu0 %v634, 1
  %v646 = vpop.permute.xlu0 %645
  %vm647 = vcmp.lt.s32.totalorder %v246, 1
  %v648 = vsel %vm647, %v644, %v646
  %v649 = vsel %vm647, %v642, %v644
  %v650 = vsel %vm647, %v640, %v642
  %v651 = vsel %vm647, %v646, %v640
  %v653 = vperm.slane %v29, 0
  %v654 = vperm.slane %v29, 1
  %v655 = vperm.slane %v29, 2
  %v656 = vperm.slane %v29, 3
  %v661 = vmul.f32 %v651, %v653
  %v662 = vmul.f32 %v650, %v654
  %v663 = vmul.f32 %v649, %v655
  %v664 = vmul.f32 %v648, %v656
  %v666 = vsel %vm67, %v37, 0
  %v669 = vsel %vm71, %v661, 0
  %v672 = vsel %vm71, %v662, 0
  %v675 = vsel %vm71, %v663, 0
  %v678 = vsel %vm71, %v664, 0
  %680 = vmatpush.msra.mxu0 0.0
  %681 = vmatpush.msra.mxu0 0.0
  %682 = vmatpush.msra.mxu0 0.0
  %683 = vmatpush.msra.mxu0 0.0
  %684 = vmatpush.msra.mxu0 0.0
  %685 = vmatpush.msra.mxu0 0.0
  %686 = vmatpush.msra.mxu0 0.0
  %687 = vmatpush.msra.mxu0 0.0
  %688 = vmatpush.msra.mxu0 0.0
  %689 = vmatpush.msra.mxu0 0.0
  %690 = vmatpush.msra.mxu0 0.0
  %691 = vmatpush.msra.mxu0 0.0
  %692 = vmatpush.msra.mxu0 0.0
  %693 = vmatpush.msra.mxu0 0.0
  %694 = vmatpush.msra.mxu0 0.0
  %695 = vmatpush.msra.mxu0 %v669
  %696 = vmatmul.f32.gmra.mxu0 %v666
  %v697 = vpop.f32.mrf.mxu0
  %v698 = vadd.f32 0.0, %v697
  %699 = vdwg.mxu0
  %700 = vmatpush.msra.mxu0 0.0
  %701 = vmatpush.msra.mxu0 0.0
  %702 = vmatpush.msra.mxu0 0.0
  %703 = vmatpush.msra.mxu0 0.0
  %704 = vmatpush.msra.mxu0 0.0
  %705 = vmatpush.msra.mxu0 0.0
  %706 = vmatpush.msra.mxu0 0.0
  %707 = vmatpush.msra.mxu0 0.0
  %708 = vmatpush.msra.mxu0 0.0
  %709 = vmatpush.msra.mxu0 0.0
  %710 = vmatpush.msra.mxu0 0.0
  %711 = vmatpush.msra.mxu0 0.0
  %712 = vmatpush.msra.mxu0 0.0
  %713 = vmatpush.msra.mxu0 0.0
  %714 = vmatpush.msra.mxu0 0.0
  %715 = vmatpush.msra.mxu0 %v672
  %716 = vmatmul.f32.gmra.mxu0 %v666
  %v717 = vpop.f32.mrf.mxu0
  %v718 = vadd.f32 0.0, %v717
  %719 = vdwg.mxu0
  %720 = vmatpush.msra.mxu0 0.0
  %721 = vmatpush.msra.mxu0 0.0
  %722 = vmatpush.msra.mxu0 0.0
  %723 = vmatpush.msra.mxu0 0.0
  %724 = vmatpush.msra.mxu0 0.0
  %725 = vmatpush.msra.mxu0 0.0
  %726 = vmatpush.msra.mxu0 0.0
  %727 = vmatpush.msra.mxu0 0.0
  %728 = vmatpush.msra.mxu0 0.0
  %729 = vmatpush.msra.mxu0 0.0
  %730 = vmatpush.msra.mxu0 0.0
  %731 = vmatpush.msra.mxu0 0.0
  %732 = vmatpush.msra.mxu0 0.0
  %733 = vmatpush.msra.mxu0 0.0
  %734 = vmatpush.msra.mxu0 0.0
  %735 = vmatpush.msra.mxu0 %v675
  %736 = vmatmul.f32.gmra.mxu0 %v666
  %v737 = vpop.f32.mrf.mxu0
  %v738 = vadd.f32 0.0, %v737
  %739 = vdwg.mxu0
  %740 = vmatpush.msra.mxu0 0.0
  %741 = vmatpush.msra.mxu0 0.0
  %742 = vmatpush.msra.mxu0 0.0
  %743 = vmatpush.msra.mxu0 0.0
  %744 = vmatpush.msra.mxu0 0.0
  %745 = vmatpush.msra.mxu0 0.0
  %746 = vmatpush.msra.mxu0 0.0
  %747 = vmatpush.msra.mxu0 0.0
  %748 = vmatpush.msra.mxu0 0.0
  %749 = vmatpush.msra.mxu0 0.0
  %750 = vmatpush.msra.mxu0 0.0
  %751 = vmatpush.msra.mxu0 0.0
  %752 = vmatpush.msra.mxu0 0.0
  %753 = vmatpush.msra.mxu0 0.0
  %754 = vmatpush.msra.mxu0 0.0
  %755 = vmatpush.msra.mxu0 %v678
  %756 = vmatmul.f32.gmra.mxu0 %v666
  %v757 = vpop.f32.mrf.mxu0
  %v758 = vadd.f32 0.0, %v757
  %759 = vdwg.mxu0
  %v760 = vadd.f32 %v624, %v698
  %v761 = vadd.f32 %v625, %v718
  %v762 = vadd.f32 %v626, %v738
  %v763 = vadd.f32 %v627, %v758
  %764 = vst [vmem:[#allocation1] ss:$2 sm:$0xff] %v23
  %s765 = scalar_lea.vmem [#allocation1], 16
  %766 = vst [vmem:[%s765] ss:$2 sm:$0xff] %v24
  %v767 = vld.sshfl [vmem:[#allocation1] sm:$0xff pattern:$0x75316420]
  %v768 = vld.sshfl [vmem:[#allocation1 + $0x8] sm:$0xff pattern:$0x75316420]
  %v769 = vld.sshfl [vmem:[#allocation1 + $0x10] sm:$0xff pattern:$0x75316420]
  %v770 = vld.sshfl [vmem:[#allocation1 + $0x18] sm:$0xff pattern:$0x75316420]
  %v772 = vsel %vm67, %v38, 0
  %v774 = vsel %vm71, %v767, 0
  %v776 = vsel %vm71, %v768, 0
  %v778 = vsel %vm71, %v769, 0
  %v780 = vsel %vm71, %v770, 0
  %782 = vmatpush.msra.mxu0 0.0
  %783 = vmatpush.msra.mxu0 0.0
  %784 = vmatpush.msra.mxu0 0.0
  %785 = vmatpush.msra.mxu0 0.0
  %786 = vmatpush.msra.mxu0 0.0
  %787 = vmatpush.msra.mxu0 0.0
  %788 = vmatpush.msra.mxu0 0.0
  %789 = vmatpush.msra.mxu0 0.0
  %790 = vmatpush.msra.mxu0 0.0
  %791 = vmatpush.msra.mxu0 0.0
  %792 = vmatpush.msra.mxu0 0.0
  %793 = vmatpush.msra.mxu0 0.0
  %794 = vmatpush.msra.mxu0 0.0
  %795 = vmatpush.msra.mxu0 0.0
  %796 = vmatpush.msra.mxu0 0.0
  %797 = vmatpush.msra.mxu0 %v774
  %798 = vmatmul.f32.gmra.mxu0 %v772
  %v799 = vpop.f32.mrf.mxu0
  %v800 = vadd.f32 0.0, %v799
  %801 = vdwg.mxu0
  %802 = vmatpush.msra.mxu0 0.0
  %803 = vmatpush.msra.mxu0 0.0
  %804 = vmatpush.msra.mxu0 0.0
  %805 = vmatpush.msra.mxu0 0.0
  %806 = vmatpush.msra.mxu0 0.0
  %807 = vmatpush.msra.mxu0 0.0
  %808 = vmatpush.msra.mxu0 0.0
  %809 = vmatpush.msra.mxu0 0.0
  %810 = vmatpush.msra.mxu0 0.0
  %811 = vmatpush.msra.mxu0 0.0
  %812 = vmatpush.msra.mxu0 0.0
  %813 = vmatpush.msra.mxu0 0.0
  %814 = vmatpush.msra.mxu0 0.0
  %815 = vmatpush.msra.mxu0 0.0
  %816 = vmatpush.msra.mxu0 0.0
  %817 = vmatpush.msra.mxu0 %v776
  %818 = vmatmul.f32.gmra.mxu0 %v772
  %v819 = vpop.f32.mrf.mxu0
  %v820 = vadd.f32 0.0, %v819
  %821 = vdwg.mxu0
  %822 = vmatpush.msra.mxu0 0.0
  %823 = vmatpush.msra.mxu0 0.0
  %824 = vmatpush.msra.mxu0 0.0
  %825 = vmatpush.msra.mxu0 0.0
  %826 = vmatpush.msra.mxu0 0.0
  %827 = vmatpush.msra.mxu0 0.0
  %828 = vmatpush.msra.mxu0 0.0
  %829 = vmatpush.msra.mxu0 0.0
  %830 = vmatpush.msra.mxu0 0.0
  %831 = vmatpush.msra.mxu0 0.0
  %832 = vmatpush.msra.mxu0 0.0
  %833 = vmatpush.msra.mxu0 0.0
  %834 = vmatpush.msra.mxu0 0.0
  %835 = vmatpush.msra.mxu0 0.0
  %836 = vmatpush.msra.mxu0 0.0
  %837 = vmatpush.msra.mxu0 %v778
  %838 = vmatmul.f32.gmra.mxu0 %v772
  %v839 = vpop.f32.mrf.mxu0
  %v840 = vadd.f32 0.0, %v839
  %841 = vdwg.mxu0
  %842 = vmatpush.msra.mxu0 0.0
  %843 = vmatpush.msra.mxu0 0.0
  %844 = vmatpush.msra.mxu0 0.0
  %845 = vmatpush.msra.mxu0 0.0
  %846 = vmatpush.msra.mxu0 0.0
  %847 = vmatpush.msra.mxu0 0.0
  %848 = vmatpush.msra.mxu0 0.0
  %849 = vmatpush.msra.mxu0 0.0
  %850 = vmatpush.msra.mxu0 0.0
  %851 = vmatpush.msra.mxu0 0.0
  %852 = vmatpush.msra.mxu0 0.0
  %853 = vmatpush.msra.mxu0 0.0
  %854 = vmatpush.msra.mxu0 0.0
  %855 = vmatpush.msra.mxu0 0.0
  %856 = vmatpush.msra.mxu0 0.0
  %857 = vmatpush.msra.mxu0 %v780
  %858 = vmatmul.f32.gmra.mxu0 %v772
  %v859 = vpop.f32.mrf.mxu0
  %v860 = vadd.f32 0.0, %v859
  %861 = vdwg.mxu0
  %v862 = vadd.f32 %v760, %v800
  %v863 = vadd.f32 %v761, %v820
  %v864 = vadd.f32 %v762, %v840
  %v865 = vadd.f32 %v763, %v860
  %866 = vst [vmem:[#allocation1] ss:$2 sm:$0xff] %v23
  %s867 = scalar_lea.vmem [#allocation1], 16
  %868 = vst [vmem:[%s867] ss:$2 sm:$0xff] %v24
  %v869 = vld.sshfl [vmem:[#allocation1] sm:$0xff pattern:$0x75316420]
  %v870 = vld.sshfl [vmem:[#allocation1 + $0x8] sm:$0xff pattern:$0x75316420]
  %v871 = vld.sshfl [vmem:[#allocation1 + $0x10] sm:$0xff pattern:$0x75316420]
  %v872 = vld.sshfl [vmem:[#allocation1 + $0x18] sm:$0xff pattern:$0x75316420]
  %877 = vrot.lane.b32.xlu0 %v869, 127
  %v878 = vpop.permute.xlu0 %877
  %879 = vrot.lane.b32.xlu0 %v870, 127
  %v880 = vpop.permute.xlu0 %879
  %881 = vrot.lane.b32.xlu0 %v871, 127
  %v882 = vpop.permute.xlu0 %881
  %883 = vrot.lane.b32.xlu0 %v872, 127
  %v884 = vpop.permute.xlu0 %883
  %vm885 = vcmp.lt.s32.totalorder %v246, 127
  %v886 = vsel %vm885, %v882, %v884
  %v887 = vsel %vm885, %v880, %v882
  %v888 = vsel %vm885, %v878, %v880
  %v889 = vsel %vm885, %v884, %v878
  %v891 = vperm.slane %v30, 0
  %v892 = vperm.slane %v30, 1
  %v893 = vperm.slane %v30, 2
  %v894 = vperm.slane %v30, 3
  %v899 = vmul.f32 %v888, %v891
  %v900 = vmul.f32 %v887, %v892
  %v901 = vmul.f32 %v886, %v893
  %v902 = vmul.f32 %v889, %v894
  %v904 = vsel %vm67, %v39, 0
  %v907 = vsel %vm71, %v899, 0
  %v910 = vsel %vm71, %v900, 0
  %v913 = vsel %vm71, %v901, 0
  %v916 = vsel %vm71, %v902, 0
  %918 = vmatpush.msra.mxu0 0.0
  %919 = vmatpush.msra.mxu0 0.0
  %920 = vmatpush.msra.mxu0 0.0
  %921 = vmatpush.msra.mxu0 0.0
  %922 = vmatpush.msra.mxu0 0.0
  %923 = vmatpush.msra.mxu0 0.0
  %924 = vmatpush.msra.mxu0 0.0
  %925 = vmatpush.msra.mxu0 0.0
  %926 = vmatpush.msra.mxu0 0.0
  %927 = vmatpush.msra.mxu0 0.0
  %928 = vmatpush.msra.mxu0 0.0
  %929 = vmatpush.msra.mxu0 0.0
  %930 = vmatpush.msra.mxu0 0.0
  %931 = vmatpush.msra.mxu0 0.0
  %932 = vmatpush.msra.mxu0 0.0
  %933 = vmatpush.msra.mxu0 %v907
  %934 = vmatmul.f32.gmra.mxu0 %v904
  %v935 = vpop.f32.mrf.mxu0
  %v936 = vadd.f32 0.0, %v935
  %937 = vdwg.mxu0
  %938 = vmatpush.msra.mxu0 0.0
  %939 = vmatpush.msra.mxu0 0.0
  %940 = vmatpush.msra.mxu0 0.0
  %941 = vmatpush.msra.mxu0 0.0
  %942 = vmatpush.msra.mxu0 0.0
  %943 = vmatpush.msra.mxu0 0.0
  %944 = vmatpush.msra.mxu0 0.0
  %945 = vmatpush.msra.mxu0 0.0
  %946 = vmatpush.msra.mxu0 0.0
  %947 = vmatpush.msra.mxu0 0.0
  %948 = vmatpush.msra.mxu0 0.0
  %949 = vmatpush.msra.mxu0 0.0
  %950 = vmatpush.msra.mxu0 0.0
  %951 = vmatpush.msra.mxu0 0.0
  %952 = vmatpush.msra.mxu0 0.0
  %953 = vmatpush.msra.mxu0 %v910
  %954 = vmatmul.f32.gmra.mxu0 %v904
  %v955 = vpop.f32.mrf.mxu0
  %v956 = vadd.f32 0.0, %v955
  %957 = vdwg.mxu0
  %958 = vmatpush.msra.mxu0 0.0
  %959 = vmatpush.msra.mxu0 0.0
  %960 = vmatpush.msra.mxu0 0.0
  %961 = vmatpush.msra.mxu0 0.0
  %962 = vmatpush.msra.mxu0 0.0
  %963 = vmatpush.msra.mxu0 0.0
  %964 = vmatpush.msra.mxu0 0.0
  %965 = vmatpush.msra.mxu0 0.0
  %966 = vmatpush.msra.mxu0 0.0
  %967 = vmatpush.msra.mxu0 0.0
  %968 = vmatpush.msra.mxu0 0.0
  %969 = vmatpush.msra.mxu0 0.0
  %970 = vmatpush.msra.mxu0 0.0
  %971 = vmatpush.msra.mxu0 0.0
  %972 = vmatpush.msra.mxu0 0.0
  %973 = vmatpush.msra.mxu0 %v913
  %974 = vmatmul.f32.gmra.mxu0 %v904
  %v975 = vpop.f32.mrf.mxu0
  %v976 = vadd.f32 0.0, %v975
  %977 = vdwg.mxu0
  %978 = vmatpush.msra.mxu0 0.0
  %979 = vmatpush.msra.mxu0 0.0
  %980 = vmatpush.msra.mxu0 0.0
  %981 = vmatpush.msra.mxu0 0.0
  %982 = vmatpush.msra.mxu0 0.0
  %983 = vmatpush.msra.mxu0 0.0
  %984 = vmatpush.msra.mxu0 0.0
  %985 = vmatpush.msra.mxu0 0.0
  %986 = vmatpush.msra.mxu0 0.0
  %987 = vmatpush.msra.mxu0 0.0
  %988 = vmatpush.msra.mxu0 0.0
  %989 = vmatpush.msra.mxu0 0.0
  %990 = vmatpush.msra.mxu0 0.0
  %991 = vmatpush.msra.mxu0 0.0
  %992 = vmatpush.msra.mxu0 0.0
  %993 = vmatpush.msra.mxu0 %v916
  %994 = vmatmul.f32.gmra.mxu0 %v904
  %v995 = vpop.f32.mrf.mxu0
  %v996 = vadd.f32 0.0, %v995
  %997 = vdwg.mxu0
  %v998 = vadd.f32 %v862, %v936
  %v999 = vadd.f32 %v863, %v956
  %v1000 = vadd.f32 %v864, %v976
  %v1001 = vadd.f32 %v865, %v996
  %1002 = vst [vmem:[#allocation1] ss:$2 sm:$0xff] %v23
  %s1003 = scalar_lea.vmem [#allocation1], 16
  %1004 = vst [vmem:[%s1003] ss:$2 sm:$0xff] %v24
  %v1005 = vld.sshfl [vmem:[#allocation1] sm:$0xff pattern:$0x75316420]
  %v1006 = vld.sshfl [vmem:[#allocation1 + $0x8] sm:$0xff pattern:$0x75316420]
  %v1007 = vld.sshfl [vmem:[#allocation1 + $0x10] sm:$0xff pattern:$0x75316420]
  %v1008 = vld.sshfl [vmem:[#allocation1 + $0x18] sm:$0xff pattern:$0x75316420]
  %1013 = vrot.lane.b32.xlu0 %v1005, 113
  %v1014 = vpop.permute.xlu0 %1013
  %1015 = vrot.lane.b32.xlu0 %v1006, 113
  %v1016 = vpop.permute.xlu0 %1015
  %1017 = vrot.lane.b32.xlu0 %v1007, 113
  %v1018 = vpop.permute.xlu0 %1017
  %1019 = vrot.lane.b32.xlu0 %v1008, 113
  %v1020 = vpop.permute.xlu0 %1019
  %vm1021 = vcmp.lt.s32.totalorder %v246, 113
  %v1022 = vsel %vm1021, %v1018, %v1020
  %v1023 = vsel %vm1021, %v1016, %v1018
  %v1024 = vsel %vm1021, %v1014, %v1016
  %v1025 = vsel %vm1021, %v1020, %v1014
  %v1027 = vperm.slane %v31, 0
  %v1028 = vperm.slane %v31, 1
  %v1029 = vperm.slane %v31, 2
  %v1030 = vperm.slane %v31, 3
  %v1035 = vmul.f32 %v1024, %v1027
  %v1036 = vmul.f32 %v1023, %v1028
  %v1037 = vmul.f32 %v1022, %v1029
  %v1038 = vmul.f32 %v1025, %v1030
  %v1040 = vsel %vm67, %v40, 0
  %v1043 = vsel %vm71, %v1035, 0
  %v1046 = vsel %vm71, %v1036, 0
  %v1049 = vsel %vm71, %v1037, 0
  %v1052 = vsel %vm71, %v1038, 0
  %1054 = vmatpush.msra.mxu0 0.0
  %1055 = vmatpush.msra.mxu0 0.0
  %1056 = vmatpush.msra.mxu0 0.0
  %1057 = vmatpush.msra.mxu0 0.0
  %1058 = vmatpush.msra.mxu0 0.0
  %1059 = vmatpush.msra.mxu0 0.0
  %1060 = vmatpush.msra.mxu0 0.0
  %1061 = vmatpush.msra.mxu0 0.0
  %1062 = vmatpush.msra.mxu0 0.0
  %1063 = vmatpush.msra.mxu0 0.0
  %1064 = vmatpush.msra.mxu0 0.0
  %1065 = vmatpush.msra.mxu0 0.0
  %1066 = vmatpush.msra.mxu0 0.0
  %1067 = vmatpush.msra.mxu0 0.0
  %1068 = vmatpush.msra.mxu0 0.0
  %1069 = vmatpush.msra.mxu0 %v1043
  %1070 = vmatmul.f32.gmra.mxu0 %v1040
  %v1071 = vpop.f32.mrf.mxu0
  %v1072 = vadd.f32 0.0, %v1071
  %1073 = vdwg.mxu0
  %1074 = vmatpush.msra.mxu0 0.0
  %1075 = vmatpush.msra.mxu0 0.0
  %1076 = vmatpush.msra.mxu0 0.0
  %1077 = vmatpush.msra.mxu0 0.0
  %1078 = vmatpush.msra.mxu0 0.0
  %1079 = vmatpush.msra.mxu0 0.0
  %1080 = vmatpush.msra.mxu0 0.0
  %1081 = vmatpush.msra.mxu0 0.0
  %1082 = vmatpush.msra.mxu0 0.0
  %1083 = vmatpush.msra.mxu0 0.0
  %1084 = vmatpush.msra.mxu0 0.0
  %1085 = vmatpush.msra.mxu0 0.0
  %1086 = vmatpush.msra.mxu0 0.0
  %1087 = vmatpush.msra.mxu0 0.0
  %1088 = vmatpush.msra.mxu0 0.0
  %1089 = vmatpush.msra.mxu0 %v1046
  %1090 = vmatmul.f32.gmra.mxu0 %v1040
  %v1091 = vpop.f32.mrf.mxu0
  %v1092 = vadd.f32 0.0, %v1091
  %1093 = vdwg.mxu0
  %1094 = vmatpush.msra.mxu0 0.0
  %1095 = vmatpush.msra.mxu0 0.0
  %1096 = vmatpush.msra.mxu0 0.0
  %1097 = vmatpush.msra.mxu0 0.0
  %1098 = vmatpush.msra.mxu0 0.0
  %1099 = vmatpush.msra.mxu0 0.0
  %1100 = vmatpush.msra.mxu0 0.0
  %1101 = vmatpush.msra.mxu0 0.0
  %1102 = vmatpush.msra.mxu0 0.0
  %1103 = vmatpush.msra.mxu0 0.0
  %1104 = vmatpush.msra.mxu0 0.0
  %1105 = vmatpush.msra.mxu0 0.0
  %1106 = vmatpush.msra.mxu0 0.0
  %1107 = vmatpush.msra.mxu0 0.0
  %1108 = vmatpush.msra.mxu0 0.0
  %1109 = vmatpush.msra.mxu0 %v1049
  %1110 = vmatmul.f32.gmra.mxu0 %v1040
  %v1111 = vpop.f32.mrf.mxu0
  %v1112 = vadd.f32 0.0, %v1111
  %1113 = vdwg.mxu0
  %1114 = vmatpush.msra.mxu0 0.0
  %1115 = vmatpush.msra.mxu0 0.0
  %1116 = vmatpush.msra.mxu0 0.0
  %1117 = vmatpush.msra.mxu0 0.0
  %1118 = vmatpush.msra.mxu0 0.0
  %1119 = vmatpush.msra.mxu0 0.0
  %1120 = vmatpush.msra.mxu0 0.0
  %1121 = vmatpush.msra.mxu0 0.0
  %1122 = vmatpush.msra.mxu0 0.0
  %1123 = vmatpush.msra.mxu0 0.0
  %1124 = vmatpush.msra.mxu0 0.0
  %1125 = vmatpush.msra.mxu0 0.0
  %1126 = vmatpush.msra.mxu0 0.0
  %1127 = vmatpush.msra.mxu0 0.0
  %1128 = vmatpush.msra.mxu0 0.0
  %1129 = vmatpush.msra.mxu0 %v1052
  %1130 = vmatmul.f32.gmra.mxu0 %v1040
  %v1131 = vpop.f32.mrf.mxu0
  %v1132 = vadd.f32 0.0, %v1131
  %1133 = vdwg.mxu0
  %v1134 = vadd.f32 %v998, %v1072
  %v1135 = vadd.f32 %v999, %v1092
  %v1136 = vadd.f32 %v1000, %v1112
  %v1137 = vadd.f32 %v1001, %v1132
  %1138 = vst [vmem:[#allocation1] ss:$2 sm:$0xff] %v23
  %s1139 = scalar_lea.vmem [#allocation1], 16
  %1140 = vst [vmem:[%s1139] ss:$2 sm:$0xff] %v24
  %v1141 = vld.sshfl [vmem:[#allocation1] sm:$0xff pattern:$0x75316420]
  %v1142 = vld.sshfl [vmem:[#allocation1 + $0x8] sm:$0xff pattern:$0x75316420]
  %v1143 = vld.sshfl [vmem:[#allocation1 + $0x10] sm:$0xff pattern:$0x75316420]
  %v1144 = vld.sshfl [vmem:[#allocation1 + $0x18] sm:$0xff pattern:$0x75316420]
  %1149 = vrot.lane.b32.xlu0 %v1141, 112
  %v1150 = vpop.permute.xlu0 %1149
  %1151 = vrot.lane.b32.xlu0 %v1142, 112
  %v1152 = vpop.permute.xlu0 %1151
  %1153 = vrot.lane.b32.xlu0 %v1143, 112
  %v1154 = vpop.permute.xlu0 %1153
  %1155 = vrot.lane.b32.xlu0 %v1144, 112
  %v1156 = vpop.permute.xlu0 %1155
  %vm1157 = vcmp.lt.s32.totalorder %v246, 112
  %v1158 = vsel %vm1157, %v1154, %v1156
  %v1159 = vsel %vm1157, %v1152, %v1154
  %v1160 = vsel %vm1157, %v1150, %v1152
  %v1161 = vsel %vm1157, %v1156, %v1150
  %v1163 = vperm.slane %v32, 0
  %v1164 = vperm.slane %v32, 1
  %v1165 = vperm.slane %v32, 2
  %v1166 = vperm.slane %v32, 3
  %v1171 = vmul.f32 %v1160, %v1163
  %v1172 = vmul.f32 %v1159, %v1164
  %v1173 = vmul.f32 %v1158, %v1165
  %v1174 = vmul.f32 %v1161, %v1166
  %v1176 = vsel %vm67, %v41, 0
  %v1179 = vsel %vm71, %v1171, 0
  %v1182 = vsel %vm71, %v1172, 0
  %v1185 = vsel %vm71, %v1173, 0
  %v1188 = vsel %vm71, %v1174, 0
  %1190 = vmatpush.msra.mxu0 0.0
  %1191 = vmatpush.msra.mxu0 0.0
  %1192 = vmatpush.msra.mxu0 0.0
  %1193 = vmatpush.msra.mxu0 0.0
  %1194 = vmatpush.msra.mxu0 0.0
  %1195 = vmatpush.msra.mxu0 0.0
  %1196 = vmatpush.msra.mxu0 0.0
  %1197 = vmatpush.msra.mxu0 0.0
  %1198 = vmatpush.msra.mxu0 0.0
  %1199 = vmatpush.msra.mxu0 0.0
  %1200 = vmatpush.msra.mxu0 0.0
  %1201 = vmatpush.msra.mxu0 0.0
  %1202 = vmatpush.msra.mxu0 0.0
  %1203 = vmatpush.msra.mxu0 0.0
  %1204 = vmatpush.msra.mxu0 0.0
  %1205 = vmatpush.msra.mxu0 %v1179
  %1206 = vmatmul.f32.gmra.mxu0 %v1176
  %v1207 = vpop.f32.mrf.mxu0
  %v1208 = vadd.f32 0.0, %v1207
  %1209 = vdwg.mxu0
  %1210 = vmatpush.msra.mxu0 0.0
  %1211 = vmatpush.msra.mxu0 0.0
  %1212 = vmatpush.msra.mxu0 0.0
  %1213 = vmatpush.msra.mxu0 0.0
  %1214 = vmatpush.msra.mxu0 0.0
  %1215 = vmatpush.msra.mxu0 0.0
  %1216 = vmatpush.msra.mxu0 0.0
  %1217 = vmatpush.msra.mxu0 0.0
  %1218 = vmatpush.msra.mxu0 0.0
  %1219 = vmatpush.msra.mxu0 0.0
  %1220 = vmatpush.msra.mxu0 0.0
  %1221 = vmatpush.msra.mxu0 0.0
  %1222 = vmatpush.msra.mxu0 0.0
  %1223 = vmatpush.msra.mxu0 0.0
  %1224 = vmatpush.msra.mxu0 0.0
  %1225 = vmatpush.msra.mxu0 %v1182
  %1226 = vmatmul.f32.gmra.mxu0 %v1176
  %v1227 = vpop.f32.mrf.mxu0
  %v1228 = vadd.f32 0.0, %v1227
  %1229 = vdwg.mxu0
  %1230 = vmatpush.msra.mxu0 0.0
  %1231 = vmatpush.msra.mxu0 0.0
  %1232 = vmatpush.msra.mxu0 0.0
  %1233 = vmatpush.msra.mxu0 0.0
  %1234 = vmatpush.msra.mxu0 0.0
  %1235 = vmatpush.msra.mxu0 0.0
  %1236 = vmatpush.msra.mxu0 0.0
  %1237 = vmatpush.msra.mxu0 0.0
  %1238 = vmatpush.msra.mxu0 0.0
  %1239 = vmatpush.msra.mxu0 0.0
  %1240 = vmatpush.msra.mxu0 0.0
  %1241 = vmatpush.msra.mxu0 0.0
  %1242 = vmatpush.msra.mxu0 0.0
  %1243 = vmatpush.msra.mxu0 0.0
  %1244 = vmatpush.msra.mxu0 0.0
  %1245 = vmatpush.msra.mxu0 %v1185
  %1246 = vmatmul.f32.gmra.mxu0 %v1176
  %v1247 = vpop.f32.mrf.mxu0
  %v1248 = vadd.f32 0.0, %v1247
  %1249 = vdwg.mxu0
  %1250 = vmatpush.msra.mxu0 0.0
  %1251 = vmatpush.msra.mxu0 0.0
  %1252 = vmatpush.msra.mxu0 0.0
  %1253 = vmatpush.msra.mxu0 0.0
  %1254 = vmatpush.msra.mxu0 0.0
  %1255 = vmatpush.msra.mxu0 0.0
  %1256 = vmatpush.msra.mxu0 0.0
  %1257 = vmatpush.msra.mxu0 0.0
  %1258 = vmatpush.msra.mxu0 0.0
  %1259 = vmatpush.msra.mxu0 0.0
  %1260 = vmatpush.msra.mxu0 0.0
  %1261 = vmatpush.msra.mxu0 0.0
  %1262 = vmatpush.msra.mxu0 0.0
  %1263 = vmatpush.msra.mxu0 0.0
  %1264 = vmatpush.msra.mxu0 0.0
  %1265 = vmatpush.msra.mxu0 %v1188
  %1266 = vmatmul.f32.gmra.mxu0 %v1176
  %v1267 = vpop.f32.mrf.mxu0
  %v1268 = vadd.f32 0.0, %v1267
  %1269 = vdwg.mxu0
  %v1270 = vadd.f32 %v1134, %v1208
  %v1271 = vadd.f32 %v1135, %v1228
  %v1272 = vadd.f32 %v1136, %v1248
  %v1273 = vadd.f32 %v1137, %v1268
  %1274 = vst [vmem:[#allocation1] ss:$2 sm:$0xff] %v23
  %s1275 = scalar_lea.vmem [#allocation1], 16
  %1276 = vst [vmem:[%s1275] ss:$2 sm:$0xff] %v24
  %v1277 = vld.sshfl [vmem:[#allocation1] sm:$0xff pattern:$0x75316420]
  %v1278 = vld.sshfl [vmem:[#allocation1 + $0x8] sm:$0xff pattern:$0x75316420]
  %v1279 = vld.sshfl [vmem:[#allocation1 + $0x10] sm:$0xff pattern:$0x75316420]
  %v1280 = vld.sshfl [vmem:[#allocation1 + $0x18] sm:$0xff pattern:$0x75316420]
  %1285 = vrot.lane.b32.xlu0 %v1277, 111
  %v1286 = vpop.permute.xlu0 %1285
  %1287 = vrot.lane.b32.xlu0 %v1278, 111
  %v1288 = vpop.permute.xlu0 %1287
  %1289 = vrot.lane.b32.xlu0 %v1279, 111
  %v1290 = vpop.permute.xlu0 %1289
  %1291 = vrot.lane.b32.xlu0 %v1280, 111
  %v1292 = vpop.permute.xlu0 %1291
  %vm1293 = vcmp.lt.s32.totalorder %v246, 111
  %v1294 = vsel %vm1293, %v1290, %v1292
  %v1295 = vsel %vm1293, %v1288, %v1290
  %v1296 = vsel %vm1293, %v1286, %v1288
  %v1297 = vsel %vm1293, %v1292, %v1286
  %v1299 = vperm.slane %v33, 0
  %v1300 = vperm.slane %v33, 1
  %v1301 = vperm.slane %v33, 2
  %v1302 = vperm.slane %v33, 3
  %v1307 = vmul.f32 %v1296, %v1299
  %v1308 = vmul.f32 %v1295, %v1300
  %v1309 = vmul.f32 %v1294, %v1301
  %v1310 = vmul.f32 %v1297, %v1302
  %v1312 = vsel %vm67, %v42, 0
  %v1315 = vsel %vm71, %v1307, 0
  %v1318 = vsel %vm71, %v1308, 0
  %v1321 = vsel %vm71, %v1309, 0
  %v1324 = vsel %vm71, %v1310, 0
  %1326 = vmatpush.msra.mxu0 0.0
  %1327 = vmatpush.msra.mxu0 0.0
  %1328 = vmatpush.msra.mxu0 0.0
  %1329 = vmatpush.msra.mxu0 0.0
  %1330 = vmatpush.msra.mxu0 0.0
  %1331 = vmatpush.msra.mxu0 0.0
  %1332 = vmatpush.msra.mxu0 0.0
  %1333 = vmatpush.msra.mxu0 0.0
  %1334 = vmatpush.msra.mxu0 0.0
  %1335 = vmatpush.msra.mxu0 0.0
  %1336 = vmatpush.msra.mxu0 0.0
  %1337 = vmatpush.msra.mxu0 0.0
  %1338 = vmatpush.msra.mxu0 0.0
  %1339 = vmatpush.msra.mxu0 0.0
  %1340 = vmatpush.msra.mxu0 0.0
  %1341 = vmatpush.msra.mxu0 %v1315
  %1342 = vmatmul.f32.gmra.mxu0 %v1312
  %v1343 = vpop.f32.mrf.mxu0
  %v1344 = vadd.f32 0.0, %v1343
  %1345 = vdwg.mxu0
  %1346 = vmatpush.msra.mxu0 0.0
  %1347 = vmatpush.msra.mxu0 0.0
  %1348 = vmatpush.msra.mxu0 0.0
  %1349 = vmatpush.msra.mxu0 0.0
  %1350 = vmatpush.msra.mxu0 0.0
  %1351 = vmatpush.msra.mxu0 0.0
  %1352 = vmatpush.msra.mxu0 0.0
  %1353 = vmatpush.msra.mxu0 0.0
  %1354 = vmatpush.msra.mxu0 0.0
  %1355 = vmatpush.msra.mxu0 0.0
  %1356 = vmatpush.msra.mxu0 0.0
  %1357 = vmatpush.msra.mxu0 0.0
  %1358 = vmatpush.msra.mxu0 0.0
  %1359 = vmatpush.msra.mxu0 0.0
  %1360 = vmatpush.msra.mxu0 0.0
  %1361 = vmatpush.msra.mxu0 %v1318
  %1362 = vmatmul.f32.gmra.mxu0 %v1312
  %v1363 = vpop.f32.mrf.mxu0
  %v1364 = vadd.f32 0.0, %v1363
  %1365 = vdwg.mxu0
  %1366 = vmatpush.msra.mxu0 0.0
  %1367 = vmatpush.msra.mxu0 0.0
  %1368 = vmatpush.msra.mxu0 0.0
  %1369 = vmatpush.msra.mxu0 0.0
  %1370 = vmatpush.msra.mxu0 0.0
  %1371 = vmatpush.msra.mxu0 0.0
  %1372 = vmatpush.msra.mxu0 0.0
  %1373 = vmatpush.msra.mxu0 0.0
  %1374 = vmatpush.msra.mxu0 0.0
  %1375 = vmatpush.msra.mxu0 0.0
  %1376 = vmatpush.msra.mxu0 0.0
  %1377 = vmatpush.msra.mxu0 0.0
  %1378 = vmatpush.msra.mxu0 0.0
  %1379 = vmatpush.msra.mxu0 0.0
  %1380 = vmatpush.msra.mxu0 0.0
  %1381 = vmatpush.msra.mxu0 %v1321
  %1382 = vmatmul.f32.gmra.mxu0 %v1312
  %v1383 = vpop.f32.mrf.mxu0
  %v1384 = vadd.f32 0.0, %v1383
  %1385 = vdwg.mxu0
  %1386 = vmatpush.msra.mxu0 0.0
  %1387 = vmatpush.msra.mxu0 0.0
  %1388 = vmatpush.msra.mxu0 0.0
  %1389 = vmatpush.msra.mxu0 0.0
  %1390 = vmatpush.msra.mxu0 0.0
  %1391 = vmatpush.msra.mxu0 0.0
  %1392 = vmatpush.msra.mxu0 0.0
  %1393 = vmatpush.msra.mxu0 0.0
  %1394 = vmatpush.msra.mxu0 0.0
  %1395 = vmatpush.msra.mxu0 0.0
  %1396 = vmatpush.msra.mxu0 0.0
  %1397 = vmatpush.msra.mxu0 0.0
  %1398 = vmatpush.msra.mxu0 0.0
  %1399 = vmatpush.msra.mxu0 0.0
  %1400 = vmatpush.msra.mxu0 0.0
  %1401 = vmatpush.msra.mxu0 %v1324
  %1402 = vmatmul.f32.gmra.mxu0 %v1312
  %v1403 = vpop.f32.mrf.mxu0
  %v1404 = vadd.f32 0.0, %v1403
  %1405 = vdwg.mxu0
  %v1406 = vadd.f32 %v1270, %v1344
  %v1407 = vadd.f32 %v1271, %v1364
  %v1408 = vadd.f32 %v1272, %v1384
  %v1409 = vadd.f32 %v1273, %v1404
  %1410 = vset.pattern.permute.xlu0 1
  %1411 = vperm.xlu0 %1410, %v25
  %v1412 = vpop.permute.xlu0 %1411
  %v1414 = vadd.f32 %v1406, %v1412
  %v1415 = vadd.f32 %v1407, %v1412
  %v1416 = vadd.f32 %v1408, %v1412
  %v1417 = vadd.f32 %v1409, %v1412
  %v1418 = vmax.f32 %v1414, 0.0
  %v1419 = vmax.f32 %v1415, 0.0
  %v1420 = vmax.f32 %v1416, 0.0
  %v1421 = vmax.f32 %v1417, 0.0
  %v1422 = vsel %vm71, %v1418, 0.0
  %v1423 = vsel %vm71, %v1419, 0.0
  %v1424 = vadd.f32 %v1422, %v1423
  %v1425 = vsel %vm71, %v1420, 0.0
  %v1426 = vadd.f32 %v1424, %v1425
  %v1427 = vsel %vm71, %v1421, 0.0
  %v1428 = vadd.f32 %v1426, %v1427
  %1429 = vadd.xlane.f32.xlu0 %v1428
  %v1430 = vpop.xlane.xlu0 %1429
  %v1431 = vmul.f32 %v1430, 0.001953125
  %v1432 = vmul.f32 %v1418, %v1418
  %v1433 = vmul.f32 %v1419, %v1419
  %v1434 = vmul.f32 %v1420, %v1420
  %v1435 = vmul.f32 %v1421, %v1421
  %v1436 = vsel %vm71, %v1432, 0.0
  %v1437 = vsel %vm71, %v1433, 0.0
  %v1438 = vadd.f32 %v1436, %v1437
  %v1439 = vsel %vm71, %v1434, 0.0
  %v1440 = vadd.f32 %v1438, %v1439
  %v1441 = vsel %vm71, %v1435, 0.0
  %v1442 = vadd.f32 %v1440, %v1441
  %1443 = vadd.xlane.f32.xlu0 %v1442
  %v1444 = vpop.xlane.xlu0 %1443
  %v1445 = vmul.f32 %v1444, 0.001953125
  %v1446 = vmul.f32 %v1431, %v1431
  %v1447 = vsub.f32 %v1445, %v1446
  %v1448 = vadd.f32 %v1447, 1e-05
  %v1449 = vrsqrt.pop %v1448
  %v1450 = vmul.f32 %v1449, %v1448
  %v1451 = vmul.f32 %v1450, %v1449
  %v1452 = vmul.f32 0.5, %v1451
  %v1453 = vsub.f32 1.5, %v1452
  %v1454 = vmul.f32 %v1449, %v1453
  %vm1455 = vweird.f32 %v1448
  %vm1456 = vweird.f32 %v1449
  %vm1457 = vmor %vm1455, %vm1456
  %v1458 = vsel %vm1457, %v1449, %v1454
  %v1459 = vmul.f32 %v25, %v1458
  %v1460 = vmul.f32 %v1431, %v1459
  %1462 = vrot.lane.b32.xlu0 %v1460, 1
  %v1463 = vpop.permute.xlu0 %1462
  %v1465 = vsub.f32 %v25, %v1463
  %1467 = vset.pattern.permute.xlu0 3
  %1468 = vperm.xlu0 %1467, %v1459
  %v1469 = vpop.permute.xlu0 %1468
  %v1471 = vmul.f32 %v1418, %v1469
  %v1472 = vmul.f32 %v1419, %v1469
  %v1473 = vmul.f32 %v1420, %v1469
  %v1474 = vmul.f32 %v1421, %v1469
  %1476 = vset.pattern.permute.xlu0 4
  %1477 = vperm.xlu0 %1476, %v1465
  %v1478 = vpop.permute.xlu0 %1477
  %v1480 = vadd.f32 %v1471, %v1478
  %v1481 = vadd.f32 %v1472, %v1478
  %v1482 = vadd.f32 %v1473, %v1478
  %v1483 = vadd.f32 %v1474, %v1478
  %1484 = vrot.lane.b32.xlu0 %v1480, 17
  %v1485 = vpop.permute.xlu0 %1484
  %1486 = vrot.lane.b32.xlu0 %v1481, 17
  %v1487 = vpop.permute.xlu0 %1486
  %1488 = vrot.lane.b32.xlu0 %v1482, 17
  %v1489 = vpop.permute.xlu0 %1488
  %1490 = vrot.lane.b32.xlu0 %v1483, 17
  %v1491 = vpop.permute.xlu0 %1490
  %v1492 = vsel %vm247, %v1489, %v1491
  %v1493 = vsel %vm247, %v1487, %v1489
  %v1494 = vsel %vm247, %v1485, %v1487
  %v1495 = vsel %vm247, %v1491, %v1485
  %v1496 = vmul.f32 %v1495, %v253
  %v1497 = vmul.f32 %v1494, %v254
  %v1498 = vmul.f32 %v1493, %v255
  %v1499 = vmul.f32 %v1492, %v256
  %1500 = vrot.lane.b32.xlu0 %v1480, 16
  %v1501 = vpop.permute.xlu0 %1500
  %1502 = vrot.lane.b32.xlu0 %v1481, 16
  %v1503 = vpop.permute.xlu0 %1502
  %1504 = vrot.lane.b32.xlu0 %v1482, 16
  %v1505 = vpop.permute.xlu0 %1504
  %1506 = vrot.lane.b32.xlu0 %v1483, 16
  %v1507 = vpop.permute.xlu0 %1506
  %v1508 = vsel %vm284, %v1505, %v1507
  %v1509 = vsel %vm284, %v1503, %v1505
  %v1510 = vsel %vm284, %v1501, %v1503
  %v1511 = vsel %vm284, %v1507, %v1501
  %v1512 = vmul.f32 %v1511, %v290
  %v1513 = vmul.f32 %v1510, %v291
  %v1514 = vmul.f32 %v1509, %v292
  %v1515 = vmul.f32 %v1508, %v293
  %v1517 = vsel %vm67, %v44, 0
  %v1520 = vsel %vm71, %v1512, 0
  %v1523 = vsel %vm71, %v1513, 0
  %v1526 = vsel %vm71, %v1514, 0
  %v1529 = vsel %vm71, %v1515, 0
  %1531 = vmatpush.msra.mxu0 0.0
  %1532 = vmatpush.msra.mxu0 0.0
  %1533 = vmatpush.msra.mxu0 0.0
  %1534 = vmatpush.msra.mxu0 0.0
  %1535 = vmatpush.msra.mxu0 0.0
  %1536 = vmatpush.msra.mxu0 0.0
  %1537 = vmatpush.msra.mxu0 0.0
  %1538 = vmatpush.msra.mxu0 0.0
  %1539 = vmatpush.msra.mxu0 0.0
  %1540 = vmatpush.msra.mxu0 0.0
  %1541 = vmatpush.msra.mxu0 0.0
  %1542 = vmatpush.msra.mxu0 0.0
  %1543 = vmatpush.msra.mxu0 0.0
  %1544 = vmatpush.msra.mxu0 0.0
  %1545 = vmatpush.msra.mxu0 0.0
  %1546 = vmatpush.msra.mxu0 %v1520
  %1547 = vmatmul.f32.gmra.mxu0 %v1517
  %v1548 = vpop.f32.mrf.mxu0
  %v1549 = vadd.f32 0.0, %v1548
  %1550 = vdwg.mxu0
  %1551 = vmatpush.msra.mxu0 0.0
  %1552 = vmatpush.msra.mxu0 0.0
  %1553 = vmatpush.msra.mxu0 0.0
  %1554 = vmatpush.msra.mxu0 0.0
  %1555 = vmatpush.msra.mxu0 0.0
  %1556 = vmatpush.msra.mxu0 0.0
  %1557 = vmatpush.msra.mxu0 0.0
  %1558 = vmatpush.msra.mxu0 0.0
  %1559 = vmatpush.msra.mxu0 0.0
  %1560 = vmatpush.msra.mxu0 0.0
  %1561 = vmatpush.msra.mxu0 0.0
  %1562 = vmatpush.msra.mxu0 0.0
  %1563 = vmatpush.msra.mxu0 0.0
  %1564 = vmatpush.msra.mxu0 0.0
  %1565 = vmatpush.msra.mxu0 0.0
  %1566 = vmatpush.msra.mxu0 %v1523
  %1567 = vmatmul.f32.gmra.mxu0 %v1517
  %v1568 = vpop.f32.mrf.mxu0
  %v1569 = vadd.f32 0.0, %v1568
  %1570 = vdwg.mxu0
  %1571 = vmatpush.msra.mxu0 0.0
  %1572 = vmatpush.msra.mxu0 0.0
  %1573 = vmatpush.msra.mxu0 0.0
  %1574 = vmatpush.msra.mxu0 0.0
  %1575 = vmatpush.msra.mxu0 0.0
  %1576 = vmatpush.msra.mxu0 0.0
  %1577 = vmatpush.msra.mxu0 0.0
  %1578 = vmatpush.msra.mxu0 0.0
  %1579 = vmatpush.msra.mxu0 0.0
  %1580 = vmatpush.msra.mxu0 0.0
  %1581 = vmatpush.msra.mxu0 0.0
  %1582 = vmatpush.msra.mxu0 0.0
  %1583 = vmatpush.msra.mxu0 0.0
  %1584 = vmatpush.msra.mxu0 0.0
  %1585 = vmatpush.msra.mxu0 0.0
  %1586 = vmatpush.msra.mxu0 %v1526
  %1587 = vmatmul.f32.gmra.mxu0 %v1517
  %v1588 = vpop.f32.mrf.mxu0
  %v1589 = vadd.f32 0.0, %v1588
  %1590 = vdwg.mxu0
  %1591 = vmatpush.msra.mxu0 0.0
  %1592 = vmatpush.msra.mxu0 0.0
  %1593 = vmatpush.msra.mxu0 0.0
  %1594 = vmatpush.msra.mxu0 0.0
  %1595 = vmatpush.msra.mxu0 0.0
  %1596 = vmatpush.msra.mxu0 0.0
  %1597 = vmatpush.msra.mxu0 0.0
  %1598 = vmatpush.msra.mxu0 0.0
  %1599 = vmatpush.msra.mxu0 0.0
  %1600 = vmatpush.msra.mxu0 0.0
  %1601 = vmatpush.msra.mxu0 0.0
  %1602 = vmatpush.msra.mxu0 0.0
  %1603 = vmatpush.msra.mxu0 0.0
  %1604 = vmatpush.msra.mxu0 0.0
  %1605 = vmatpush.msra.mxu0 0.0
  %1606 = vmatpush.msra.mxu0 %v1529
  %1607 = vmatmul.f32.gmra.mxu0 %v1517
  %v1608 = vpop.f32.mrf.mxu0
  %v1609 = vadd.f32 0.0, %v1608
  %1610 = vdwg.mxu0
  %v1612 = vsel %vm67, %v43, 0
  %v1615 = vsel %vm71, %v1496, 0
  %v1618 = vsel %vm71, %v1497, 0
  %v1621 = vsel %vm71, %v1498, 0
  %v1624 = vsel %vm71, %v1499, 0
  %1626 = vmatpush.msra.mxu0 0.0
  %1627 = vmatpush.msra.mxu0 0.0
  %1628 = vmatpush.msra.mxu0 0.0
  %1629 = vmatpush.msra.mxu0 0.0
  %1630 = vmatpush.msra.mxu0 0.0
  %1631 = vmatpush.msra.mxu0 0.0
  %1632 = vmatpush.msra.mxu0 0.0
  %1633 = vmatpush.msra.mxu0 0.0
  %1634 = vmatpush.msra.mxu0 0.0
  %1635 = vmatpush.msra.mxu0 0.0
  %1636 = vmatpush.msra.mxu0 0.0
  %1637 = vmatpush.msra.mxu0 0.0
  %1638 = vmatpush.msra.mxu0 0.0
  %1639 = vmatpush.msra.mxu0 0.0
  %1640 = vmatpush.msra.mxu0 0.0
  %1641 = vmatpush.msra.mxu0 %v1615
  %1642 = vmatmul.f32.gmra.mxu0 %v1612
  %v1643 = vpop.f32.mrf.mxu0
  %v1644 = vadd.f32 %v1549, %v1643
  %1645 = vdwg.mxu0
  %1646 = vmatpush.msra.mxu0 0.0
  %1647 = vmatpush.msra.mxu0 0.0
  %1648 = vmatpush.msra.mxu0 0.0
  %1649 = vmatpush.msra.mxu0 0.0
  %1650 = vmatpush.msra.mxu0 0.0
  %1651 = vmatpush.msra.mxu0 0.0
  %1652 = vmatpush.msra.mxu0 0.0
  %1653 = vmatpush.msra.mxu0 0.0
  %1654 = vmatpush.msra.mxu0 0.0
  %1655 = vmatpush.msra.mxu0 0.0
  %1656 = vmatpush.msra.mxu0 0.0
  %1657 = vmatpush.msra.mxu0 0.0
  %1658 = vmatpush.msra.mxu0 0.0
  %1659 = vmatpush.msra.mxu0 0.0
  %1660 = vmatpush.msra.mxu0 0.0
  %1661 = vmatpush.msra.mxu0 %v1618
  %1662 = vmatmul.f32.gmra.mxu0 %v1612
  %v1663 = vpop.f32.mrf.mxu0
  %v1664 = vadd.f32 %v1569, %v1663
  %1665 = vdwg.mxu0
  %1666 = vmatpush.msra.mxu0 0.0
  %1667 = vmatpush.msra.mxu0 0.0
  %1668 = vmatpush.msra.mxu0 0.0
  %1669 = vmatpush.msra.mxu0 0.0
  %1670 = vmatpush.msra.mxu0 0.0
  %1671 = vmatpush.msra.mxu0 0.0
  %1672 = vmatpush.msra.mxu0 0.0
  %1673 = vmatpush.msra.mxu0 0.0
  %1674 = vmatpush.msra.mxu0 0.0
  %1675 = vmatpush.msra.mxu0 0.0
  %1676 = vmatpush.msra.mxu0 0.0
  %1677 = vmatpush.msra.mxu0 0.0
  %1678 = vmatpush.msra.mxu0 0.0
  %1679 = vmatpush.msra.mxu0 0.0
  %1680 = vmatpush.msra.mxu0 0.0
  %1681 = vmatpush.msra.mxu0 %v1621
  %1682 = vmatmul.f32.gmra.mxu0 %v1612
  %v1683 = vpop.f32.mrf.mxu0
  %v1684 = vadd.f32 %v1589, %v1683
  %1685 = vdwg.mxu0
  %1686 = vmatpush.msra.mxu0 0.0
  %1687 = vmatpush.msra.mxu0 0.0
  %1688 = vmatpush.msra.mxu0 0.0
  %1689 = vmatpush.msra.mxu0 0.0
  %1690 = vmatpush.msra.mxu0 0.0
  %1691 = vmatpush.msra.mxu0 0.0
  %1692 = vmatpush.msra.mxu0 0.0
  %1693 = vmatpush.msra.mxu0 0.0
  %1694 = vmatpush.msra.mxu0 0.0
  %1695 = vmatpush.msra.mxu0 0.0
  %1696 = vmatpush.msra.mxu0 0.0
  %1697 = vmatpush.msra.mxu0 0.0
  %1698 = vmatpush.msra.mxu0 0.0
  %1699 = vmatpush.msra.mxu0 0.0
  %1700 = vmatpush.msra.mxu0 0.0
  %1701 = vmatpush.msra.mxu0 %v1624
  %1702 = vmatmul.f32.gmra.mxu0 %v1612
  %v1703 = vpop.f32.mrf.mxu0
  %v1704 = vadd.f32 %v1609, %v1703
  %1705 = vdwg.mxu0
  %1706 = vrot.lane.b32.xlu0 %v1480, 15
  %v1707 = vpop.permute.xlu0 %1706
  %1708 = vrot.lane.b32.xlu0 %v1481, 15
  %v1709 = vpop.permute.xlu0 %1708
  %1710 = vrot.lane.b32.xlu0 %v1482, 15
  %v1711 = vpop.permute.xlu0 %1710
  %1712 = vrot.lane.b32.xlu0 %v1483, 15
  %v1713 = vpop.permute.xlu0 %1712
  %v1714 = vsel %vm511, %v1711, %v1713
  %v1715 = vsel %vm511, %v1709, %v1711
  %v1716 = vsel %vm511, %v1707, %v1709
  %v1717 = vsel %vm511, %v1713, %v1707
  %v1718 = vmul.f32 %v1717, %v517
  %v1719 = vmul.f32 %v1716, %v518
  %v1720 = vmul.f32 %v1715, %v519
  %v1721 = vmul.f32 %v1714, %v520
  %v1723 = vsel %vm67, %v45, 0
  %v1726 = vsel %vm71, %v1718, 0
  %v1729 = vsel %vm71, %v1719, 0
  %v1732 = vsel %vm71, %v1720, 0
  %v1735 = vsel %vm71, %v1721, 0
  %1737 = vmatpush.msra.mxu0 0.0
  %1738 = vmatpush.msra.mxu0 0.0
  %1739 = vmatpush.msra.mxu0 0.0
  %1740 = vmatpush.msra.mxu0 0.0
  %1741 = vmatpush.msra.mxu0 0.0
  %1742 = vmatpush.msra.mxu0 0.0
  %1743 = vmatpush.msra.mxu0 0.0
  %1744 = vmatpush.msra.mxu0 0.0
  %1745 = vmatpush.msra.mxu0 0.0
  %1746 = vmatpush.msra.mxu0 0.0
  %1747 = vmatpush.msra.mxu0 0.0
  %1748 = vmatpush.msra.mxu0 0.0
  %1749 = vmatpush.msra.mxu0 0.0
  %1750 = vmatpush.msra.mxu0 0.0
  %1751 = vmatpush.msra.mxu0 0.0
  %1752 = vmatpush.msra.mxu0 %v1726
  %1753 = vmatmul.f32.gmra.mxu0 %v1723
  %v1754 = vpop.f32.mrf.mxu0
  %v1755 = vadd.f32 0.0, %v1754
  %1756 = vdwg.mxu0
  %1757 = vmatpush.msra.mxu0 0.0
  %1758 = vmatpush.msra.mxu0 0.0
  %1759 = vmatpush.msra.mxu0 0.0
  %1760 = vmatpush.msra.mxu0 0.0
  %1761 = vmatpush.msra.mxu0 0.0
  %1762 = vmatpush.msra.mxu0 0.0
  %1763 = vmatpush.msra.mxu0 0.0
  %1764 = vmatpush.msra.mxu0 0.0
  %1765 = vmatpush.msra.mxu0 0.0
  %1766 = vmatpush.msra.mxu0 0.0
  %1767 = vmatpush.msra.mxu0 0.0
  %1768 = vmatpush.msra.mxu0 0.0
  %1769 = vmatpush.msra.mxu0 0.0
  %1770 = vmatpush.msra.mxu0 0.0
  %1771 = vmatpush.msra.mxu0 0.0
  %1772 = vmatpush.msra.mxu0 %v1729
  %1773 = vmatmul.f32.gmra.mxu0 %v1723
  %v1774 = vpop.f32.mrf.mxu0
  %v1775 = vadd.f32 0.0, %v1774
  %1776 = vdwg.mxu0
  %1777 = vmatpush.msra.mxu0 0.0
  %1778 = vmatpush.msra.mxu0 0.0
  %1779 = vmatpush.msra.mxu0 0.0
  %1780 = vmatpush.msra.mxu0 0.0
  %1781 = vmatpush.msra.mxu0 0.0
  %1782 = vmatpush.msra.mxu0 0.0
  %1783 = vmatpush.msra.mxu0 0.0
  %1784 = vmatpush.msra.mxu0 0.0
  %1785 = vmatpush.msra.mxu0 0.0
  %1786 = vmatpush.msra.mxu0 0.0
  %1787 = vmatpush.msra.mxu0 0.0
  %1788 = vmatpush.msra.mxu0 0.0
  %1789 = vmatpush.msra.mxu0 0.0
  %1790 = vmatpush.msra.mxu0 0.0
  %1791 = vmatpush.msra.mxu0 0.0
  %1792 = vmatpush.msra.mxu0 %v1732
  %1793 = vmatmul.f32.gmra.mxu0 %v1723
  %v1794 = vpop.f32.mrf.mxu0
  %v1795 = vadd.f32 0.0, %v1794
  %1796 = vdwg.mxu0
  %1797 = vmatpush.msra.mxu0 0.0
  %1798 = vmatpush.msra.mxu0 0.0
  %1799 = vmatpush.msra.mxu0 0.0
  %1800 = vmatpush.msra.mxu0 0.0
  %1801 = vmatpush.msra.mxu0 0.0
  %1802 = vmatpush.msra.mxu0 0.0
  %1803 = vmatpush.msra.mxu0 0.0
  %1804 = vmatpush.msra.mxu0 0.0
  %1805 = vmatpush.msra.mxu0 0.0
  %1806 = vmatpush.msra.mxu0 0.0
  %1807 = vmatpush.msra.mxu0 0.0
  %1808 = vmatpush.msra.mxu0 0.0
  %1809 = vmatpush.msra.mxu0 0.0
  %1810 = vmatpush.msra.mxu0 0.0
  %1811 = vmatpush.msra.mxu0 0.0
  %1812 = vmatpush.msra.mxu0 %v1735
  %1813 = vmatmul.f32.gmra.mxu0 %v1723
  %v1814 = vpop.f32.mrf.mxu0
  %v1815 = vadd.f32 0.0, %v1814
  %1816 = vdwg.mxu0
  %v1817 = vadd.f32 %v1644, %v1755
  %v1818 = vadd.f32 %v1664, %v1775
  %v1819 = vadd.f32 %v1684, %v1795
  %v1820 = vadd.f32 %v1704, %v1815
  %1821 = vrot.lane.b32.xlu0 %v1480, 1
  %v1822 = vpop.permute.xlu0 %1821
  %1823 = vrot.lane.b32.xlu0 %v1481, 1
  %v1824 = vpop.permute.xlu0 %1823
  %1825 = vrot.lane.b32.xlu0 %v1482, 1
  %v1826 = vpop.permute.xlu0 %1825
  %1827 = vrot.lane.b32.xlu0 %v1483, 1
  %v1828 = vpop.permute.xlu0 %1827
  %v1829 = vsel %vm647, %v1826, %v1828
  %v1830 = vsel %vm647, %v1824, %v1826
  %v1831 = vsel %vm647, %v1822, %v1824
  %v1832 = vsel %vm647, %v1828, %v1822
  %v1833 = vmul.f32 %v1832, %v653
  %v1834 = vmul.f32 %v1831, %v654
  %v1835 = vmul.f32 %v1830, %v655
  %v1836 = vmul.f32 %v1829, %v656
  %v1838 = vsel %vm67, %v46, 0
  %v1841 = vsel %vm71, %v1833, 0
  %v1844 = vsel %vm71, %v1834, 0
  %v1847 = vsel %vm71, %v1835, 0
  %v1850 = vsel %vm71, %v1836, 0
  %1852 = vmatpush.msra.mxu0 0.0
  %1853 = vmatpush.msra.mxu0 0.0
  %1854 = vmatpush.msra.mxu0 0.0
  %1855 = vmatpush.msra.mxu0 0.0
  %1856 = vmatpush.msra.mxu0 0.0
  %1857 = vmatpush.msra.mxu0 0.0
  %1858 = vmatpush.msra.mxu0 0.0
  %1859 = vmatpush.msra.mxu0 0.0
  %1860 = vmatpush.msra.mxu0 0.0
  %1861 = vmatpush.msra.mxu0 0.0
  %1862 = vmatpush.msra.mxu0 0.0
  %1863 = vmatpush.msra.mxu0 0.0
  %1864 = vmatpush.msra.mxu0 0.0
  %1865 = vmatpush.msra.mxu0 0.0
  %1866 = vmatpush.msra.mxu0 0.0
  %1867 = vmatpush.msra.mxu0 %v1841
  %1868 = vmatmul.f32.gmra.mxu0 %v1838
  %v1869 = vpop.f32.mrf.mxu0
  %v1870 = vadd.f32 0.0, %v1869
  %1871 = vdwg.mxu0
  %1872 = vmatpush.msra.mxu0 0.0
  %1873 = vmatpush.msra.mxu0 0.0
  %1874 = vmatpush.msra.mxu0 0.0
  %1875 = vmatpush.msra.mxu0 0.0
  %1876 = vmatpush.msra.mxu0 0.0
  %1877 = vmatpush.msra.mxu0 0.0
  %1878 = vmatpush.msra.mxu0 0.0
  %1879 = vmatpush.msra.mxu0 0.0
  %1880 = vmatpush.msra.mxu0 0.0
  %1881 = vmatpush.msra.mxu0 0.0
  %1882 = vmatpush.msra.mxu0 0.0
  %1883 = vmatpush.msra.mxu0 0.0
  %1884 = vmatpush.msra.mxu0 0.0
  %1885 = vmatpush.msra.mxu0 0.0
  %1886 = vmatpush.msra.mxu0 0.0
  %1887 = vmatpush.msra.mxu0 %v1844
  %1888 = vmatmul.f32.gmra.mxu0 %v1838
  %v1889 = vpop.f32.mrf.mxu0
  %v1890 = vadd.f32 0.0, %v1889
  %1891 = vdwg.mxu0
  %1892 = vmatpush.msra.mxu0 0.0
  %1893 = vmatpush.msra.mxu0 0.0
  %1894 = vmatpush.msra.mxu0 0.0
  %1895 = vmatpush.msra.mxu0 0.0
  %1896 = vmatpush.msra.mxu0 0.0
  %1897 = vmatpush.msra.mxu0 0.0
  %1898 = vmatpush.msra.mxu0 0.0
  %1899 = vmatpush.msra.mxu0 0.0
  %1900 = vmatpush.msra.mxu0 0.0
  %1901 = vmatpush.msra.mxu0 0.0
  %1902 = vmatpush.msra.mxu0 0.0
  %1903 = vmatpush.msra.mxu0 0.0
  %1904 = vmatpush.msra.mxu0 0.0
  %1905 = vmatpush.msra.mxu0 0.0
  %1906 = vmatpush.msra.mxu0 0.0
  %1907 = vmatpush.msra.mxu0 %v1847
  %1908 = vmatmul.f32.gmra.mxu0 %v1838
  %v1909 = vpop.f32.mrf.mxu0
  %v1910 = vadd.f32 0.0, %v1909
  %1911 = vdwg.mxu0
  %1912 = vmatpush.msra.mxu0 0.0
  %1913 = vmatpush.msra.mxu0 0.0
  %1914 = vmatpush.msra.mxu0 0.0
  %1915 = vmatpush.msra.mxu0 0.0
  %1916 = vmatpush.msra.mxu0 0.0
  %1917 = vmatpush.msra.mxu0 0.0
  %1918 = vmatpush.msra.mxu0 0.0
  %1919 = vmatpush.msra.mxu0 0.0
  %1920 = vmatpush.msra.mxu0 0.0
  %1921 = vmatpush.msra.mxu0 0.0
  %1922 = vmatpush.msra.mxu0 0.0
  %1923 = vmatpush.msra.mxu0 0.0
  %1924 = vmatpush.msra.mxu0 0.0
  %1925 = vmatpush.msra.mxu0 0.0
  %1926 = vmatpush.msra.mxu0 0.0
  %1927 = vmatpush.msra.mxu0 %v1850
  %1928 = vmatmul.f32.gmra.mxu0 %v1838
  %v1929 = vpop.f32.mrf.mxu0
  %v1930 = vadd.f32 0.0, %v1929
  %1931 = vdwg.mxu0
  %v1932 = vadd.f32 %v1817, %v1870
  %v1933 = vadd.f32 %v1818, %v1890
  %v1934 = vadd.f32 %v1819, %v1910
  %v1935 = vadd.f32 %v1820, %v1930
  %v1937 = vsel %vm67, %v47, 0
  %v1940 = vsel %vm71, %v1480, 0
  %v1943 = vsel %vm71, %v1481, 0
  %v1946 = vsel %vm71, %v1482, 0
  %v1949 = vsel %vm71, %v1483, 0
  %1951 = vmatpush.msra.mxu0 0.0
  %1952 = vmatpush.msra.mxu0 0.0
  %1953 = vmatpush.msra.mxu0 0.0
  %1954 = vmatpush.msra.mxu0 0.0
  %1955 = vmatpush.msra.mxu0 0.0
  %1956 = vmatpush.msra.mxu0 0.0
  %1957 = vmatpush.msra.mxu0 0.0
  %1958 = vmatpush.msra.mxu0 0.0
  %1959 = vmatpush.msra.mxu0 0.0
  %1960 = vmatpush.msra.mxu0 0.0
  %1961 = vmatpush.msra.mxu0 0.0
  %1962 = vmatpush.msra.mxu0 0.0
  %1963 = vmatpush.msra.mxu0 0.0
  %1964 = vmatpush.msra.mxu0 0.0
  %1965 = vmatpush.msra.mxu0 0.0
  %1966 = vmatpush.msra.mxu0 %v1940
  %1967 = vmatmul.f32.gmra.mxu0 %v1937
  %v1968 = vpop.f32.mrf.mxu0
  %v1969 = vadd.f32 0.0, %v1968
  %1970 = vdwg.mxu0
  %1971 = vmatpush.msra.mxu0 0.0
  %1972 = vmatpush.msra.mxu0 0.0
  %1973 = vmatpush.msra.mxu0 0.0
  %1974 = vmatpush.msra.mxu0 0.0
  %1975 = vmatpush.msra.mxu0 0.0
  %1976 = vmatpush.msra.mxu0 0.0
  %1977 = vmatpush.msra.mxu0 0.0
  %1978 = vmatpush.msra.mxu0 0.0
  %1979 = vmatpush.msra.mxu0 0.0
  %1980 = vmatpush.msra.mxu0 0.0
  %1981 = vmatpush.msra.mxu0 0.0
  %1982 = vmatpush.msra.mxu0 0.0
  %1983 = vmatpush.msra.mxu0 0.0
  %1984 = vmatpush.msra.mxu0 0.0
  %1985 = vmatpush.msra.mxu0 0.0
  %1986 = vmatpush.msra.mxu0 %v1943
  %1987 = vmatmul.f32.gmra.mxu0 %v1937
  %v1988 = vpop.f32.mrf.mxu0
  %v1989 = vadd.f32 0.0, %v1988
  %1990 = vdwg.mxu0
  %1991 = vmatpush.msra.mxu0 0.0
  %1992 = vmatpush.msra.mxu0 0.0
  %1993 = vmatpush.msra.mxu0 0.0
  %1994 = vmatpush.msra.mxu0 0.0
  %1995 = vmatpush.msra.mxu0 0.0
  %1996 = vmatpush.msra.mxu0 0.0
  %1997 = vmatpush.msra.mxu0 0.0
  %1998 = vmatpush.msra.mxu0 0.0
  %1999 = vmatpush.msra.mxu0 0.0
  %2000 = vmatpush.msra.mxu0 0.0
  %2001 = vmatpush.msra.mxu0 0.0
  %2002 = vmatpush.msra.mxu0 0.0
  %2003 = vmatpush.msra.mxu0 0.0
  %2004 = vmatpush.msra.mxu0 0.0
  %2005 = vmatpush.msra.mxu0 0.0
  %2006 = vmatpush.msra.mxu0 %v1946
  %2007 = vmatmul.f32.gmra.mxu0 %v1937
  %v2008 = vpop.f32.mrf.mxu0
  %v2009 = vadd.f32 0.0, %v2008
  %2010 = vdwg.mxu0
  %2011 = vmatpush.msra.mxu0 0.0
  %2012 = vmatpush.msra.mxu0 0.0
  %2013 = vmatpush.msra.mxu0 0.0
  %2014 = vmatpush.msra.mxu0 0.0
  %2015 = vmatpush.msra.mxu0 0.0
  %2016 = vmatpush.msra.mxu0 0.0
  %2017 = vmatpush.msra.mxu0 0.0
  %2018 = vmatpush.msra.mxu0 0.0
  %2019 = vmatpush.msra.mxu0 0.0
  %2020 = vmatpush.msra.mxu0 0.0
  %2021 = vmatpush.msra.mxu0 0.0
  %2022 = vmatpush.msra.mxu0 0.0
  %2023 = vmatpush.msra.mxu0 0.0
  %2024 = vmatpush.msra.mxu0 0.0
  %2025 = vmatpush.msra.mxu0 0.0
  %2026 = vmatpush.msra.mxu0 %v1949
  %2027 = vmatmul.f32.gmra.mxu0 %v1937
  %v2028 = vpop.f32.mrf.mxu0
  %v2029 = vadd.f32 0.0, %v2028
  %2030 = vdwg.mxu0
  %v2031 = vadd.f32 %v1932, %v1969
  %v2032 = vadd.f32 %v1933, %v1989
  %v2033 = vadd.f32 %v1934, %v2009
  %v2034 = vadd.f32 %v1935, %v2029
  %2035 = vrot.lane.b32.xlu0 %v1480, 127
  %v2036 = vpop.permute.xlu0 %2035
  %2037 = vrot.lane.b32.xlu0 %v1481, 127
  %v2038 = vpop.permute.xlu0 %2037
  %2039 = vrot.lane.b32.xlu0 %v1482, 127
  %v2040 = vpop.permute.xlu0 %2039
  %2041 = vrot.lane.b32.xlu0 %v1483, 127
  %v2042 = vpop.permute.xlu0 %2041
  %v2043 = vsel %vm885, %v2040, %v2042
  %v2044 = vsel %vm885, %v2038, %v2040
  %v2045 = vsel %vm885, %v2036, %v2038
  %v2046 = vsel %vm885, %v2042, %v2036
  %v2047 = vmul.f32 %v2045, %v891
  %v2048 = vmul.f32 %v2044, %v892
  %v2049 = vmul.f32 %v2043, %v893
  %v2050 = vmul.f32 %v2046, %v894
  %v2052 = vsel %vm67, %v48, 0
  %v2055 = vsel %vm71, %v2047, 0
  %v2058 = vsel %vm71, %v2048, 0
  %v2061 = vsel %vm71, %v2049, 0
  %v2064 = vsel %vm71, %v2050, 0
  %2066 = vmatpush.msra.mxu0 0.0
  %2067 = vmatpush.msra.mxu0 0.0
  %2068 = vmatpush.msra.mxu0 0.0
  %2069 = vmatpush.msra.mxu0 0.0
  %2070 = vmatpush.msra.mxu0 0.0
  %2071 = vmatpush.msra.mxu0 0.0
  %2072 = vmatpush.msra.mxu0 0.0
  %2073 = vmatpush.msra.mxu0 0.0
  %2074 = vmatpush.msra.mxu0 0.0
  %2075 = vmatpush.msra.mxu0 0.0
  %2076 = vmatpush.msra.mxu0 0.0
  %2077 = vmatpush.msra.mxu0 0.0
  %2078 = vmatpush.msra.mxu0 0.0
  %2079 = vmatpush.msra.mxu0 0.0
  %2080 = vmatpush.msra.mxu0 0.0
  %2081 = vmatpush.msra.mxu0 %v2055
  %2082 = vmatmul.f32.gmra.mxu0 %v2052
  %v2083 = vpop.f32.mrf.mxu0
  %v2084 = vadd.f32 0.0, %v2083
  %2085 = vdwg.mxu0
  %2086 = vmatpush.msra.mxu0 0.0
  %2087 = vmatpush.msra.mxu0 0.0
  %2088 = vmatpush.msra.mxu0 0.0
  %2089 = vmatpush.msra.mxu0 0.0
  %2090 = vmatpush.msra.mxu0 0.0
  %2091 = vmatpush.msra.mxu0 0.0
  %2092 = vmatpush.msra.mxu0 0.0
  %2093 = vmatpush.msra.mxu0 0.0
  %2094 = vmatpush.msra.mxu0 0.0
  %2095 = vmatpush.msra.mxu0 0.0
  %2096 = vmatpush.msra.mxu0 0.0
  %2097 = vmatpush.msra.mxu0 0.0
  %2098 = vmatpush.msra.mxu0 0.0
  %2099 = vmatpush.msra.mxu0 0.0
  %2100 = vmatpush.msra.mxu0 0.0
  %2101 = vmatpush.msra.mxu0 %v2058
  %2102 = vmatmul.f32.gmra.mxu0 %v2052
  %v2103 = vpop.f32.mrf.mxu0
  %v2104 = vadd.f32 0.0, %v2103
  %2105 = vdwg.mxu0
  %2106 = vmatpush.msra.mxu0 0.0
  %2107 = vmatpush.msra.mxu0 0.0
  %2108 = vmatpush.msra.mxu0 0.0
  %2109 = vmatpush.msra.mxu0 0.0
  %2110 = vmatpush.msra.mxu0 0.0
  %2111 = vmatpush.msra.mxu0 0.0
  %2112 = vmatpush.msra.mxu0 0.0
  %2113 = vmatpush.msra.mxu0 0.0
  %2114 = vmatpush.msra.mxu0 0.0
  %2115 = vmatpush.msra.mxu0 0.0
  %2116 = vmatpush.msra.mxu0 0.0
  %2117 = vmatpush.msra.mxu0 0.0
  %2118 = vmatpush.msra.mxu0 0.0
  %2119 = vmatpush.msra.mxu0 0.0
  %2120 = vmatpush.msra.mxu0 0.0
  %2121 = vmatpush.msra.mxu0 %v2061
  %2122 = vmatmul.f32.gmra.mxu0 %v2052
  %v2123 = vpop.f32.mrf.mxu0
  %v2124 = vadd.f32 0.0, %v2123
  %2125 = vdwg.mxu0
  %2126 = vmatpush.msra.mxu0 0.0
  %2127 = vmatpush.msra.mxu0 0.0
  %2128 = vmatpush.msra.mxu0 0.0
  %2129 = vmatpush.msra.mxu0 0.0
  %2130 = vmatpush.msra.mxu0 0.0
  %2131 = vmatpush.msra.mxu0 0.0
  %2132 = vmatpush.msra.mxu0 0.0
  %2133 = vmatpush.msra.mxu0 0.0
  %2134 = vmatpush.msra.mxu0 0.0
  %2135 = vmatpush.msra.mxu0 0.0
  %2136 = vmatpush.msra.mxu0 0.0
  %2137 = vmatpush.msra.mxu0 0.0
  %2138 = vmatpush.msra.mxu0 0.0
  %2139 = vmatpush.msra.mxu0 0.0
  %2140 = vmatpush.msra.mxu0 0.0
  %2141 = vmatpush.msra.mxu0 %v2064
  %2142 = vmatmul.f32.gmra.mxu0 %v2052
  %v2143 = vpop.f32.mrf.mxu0
  %v2144 = vadd.f32 0.0, %v2143
  %2145 = vdwg.mxu0
  %v2146 = vadd.f32 %v2031, %v2084
  %v2147 = vadd.f32 %v2032, %v2104
  %v2148 = vadd.f32 %v2033, %v2124
  %v2149 = vadd.f32 %v2034, %v2144
  %2150 = vrot.lane.b32.xlu0 %v1480, 113
  %v2151 = vpop.permute.xlu0 %2150
  %2152 = vrot.lane.b32.xlu0 %v1481, 113
  %v2153 = vpop.permute.xlu0 %2152
  %2154 = vrot.lane.b32.xlu0 %v1482, 113
  %v2155 = vpop.permute.xlu0 %2154
  %2156 = vrot.lane.b32.xlu0 %v1483, 113
  %v2157 = vpop.permute.xlu0 %2156
  %v2158 = vsel %vm1021, %v2155, %v2157
  %v2159 = vsel %vm1021, %v2153, %v2155
  %v2160 = vsel %vm1021, %v2151, %v2153
  %v2161 = vsel %vm1021, %v2157, %v2151
  %v2162 = vmul.f32 %v2160, %v1027
  %v2163 = vmul.f32 %v2159, %v1028
  %v2164 = vmul.f32 %v2158, %v1029
  %v2165 = vmul.f32 %v2161, %v1030
  %v2167 = vsel %vm67, %v49, 0
  %v2170 = vsel %vm71, %v2162, 0
  %v2173 = vsel %vm71, %v2163, 0
  %v2176 = vsel %vm71, %v2164, 0
  %v2179 = vsel %vm71, %v2165, 0
  %2181 = vmatpush.msra.mxu0 0.0
  %2182 = vmatpush.msra.mxu0 0.0
  %2183 = vmatpush.msra.mxu0 0.0
  %2184 = vmatpush.msra.mxu0 0.0
  %2185 = vmatpush.msra.mxu0 0.0
  %2186 = vmatpush.msra.mxu0 0.0
  %2187 = vmatpush.msra.mxu0 0.0
  %2188 = vmatpush.msra.mxu0 0.0
  %2189 = vmatpush.msra.mxu0 0.0
  %2190 = vmatpush.msra.mxu0 0.0
  %2191 = vmatpush.msra.mxu0 0.0
  %2192 = vmatpush.msra.mxu0 0.0
  %2193 = vmatpush.msra.mxu0 0.0
  %2194 = vmatpush.msra.mxu0 0.0
  %2195 = vmatpush.msra.mxu0 0.0
  %2196 = vmatpush.msra.mxu0 %v2170
  %2197 = vmatmul.f32.gmra.mxu0 %v2167
  %v2198 = vpop.f32.mrf.mxu0
  %v2199 = vadd.f32 0.0, %v2198
  %2200 = vdwg.mxu0
  %2201 = vmatpush.msra.mxu0 0.0
  %2202 = vmatpush.msra.mxu0 0.0
  %2203 = vmatpush.msra.mxu0 0.0
  %2204 = vmatpush.msra.mxu0 0.0
  %2205 = vmatpush.msra.mxu0 0.0
  %2206 = vmatpush.msra.mxu0 0.0
  %2207 = vmatpush.msra.mxu0 0.0
  %2208 = vmatpush.msra.mxu0 0.0
  %2209 = vmatpush.msra.mxu0 0.0
  %2210 = vmatpush.msra.mxu0 0.0
  %2211 = vmatpush.msra.mxu0 0.0
  %2212 = vmatpush.msra.mxu0 0.0
  %2213 = vmatpush.msra.mxu0 0.0
  %2214 = vmatpush.msra.mxu0 0.0
  %2215 = vmatpush.msra.mxu0 0.0
  %2216 = vmatpush.msra.mxu0 %v2173
  %2217 = vmatmul.f32.gmra.mxu0 %v2167
  %v2218 = vpop.f32.mrf.mxu0
  %v2219 = vadd.f32 0.0, %v2218
  %2220 = vdwg.mxu0
  %2221 = vmatpush.msra.mxu0 0.0
  %2222 = vmatpush.msra.mxu0 0.0
  %2223 = vmatpush.msra.mxu0 0.0
  %2224 = vmatpush.msra.mxu0 0.0
  %2225 = vmatpush.msra.mxu0 0.0
  %2226 = vmatpush.msra.mxu0 0.0
  %2227 = vmatpush.msra.mxu0 0.0
  %2228 = vmatpush.msra.mxu0 0.0
  %2229 = vmatpush.msra.mxu0 0.0
  %2230 = vmatpush.msra.mxu0 0.0
  %2231 = vmatpush.msra.mxu0 0.0
  %2232 = vmatpush.msra.mxu0 0.0
  %2233 = vmatpush.msra.mxu0 0.0
  %2234 = vmatpush.msra.mxu0 0.0
  %2235 = vmatpush.msra.mxu0 0.0
  %2236 = vmatpush.msra.mxu0 %v2176
  %2237 = vmatmul.f32.gmra.mxu0 %v2167
  %v2238 = vpop.f32.mrf.mxu0
  %v2239 = vadd.f32 0.0, %v2238
  %2240 = vdwg.mxu0
  %2241 = vmatpush.msra.mxu0 0.0
  %2242 = vmatpush.msra.mxu0 0.0
  %2243 = vmatpush.msra.mxu0 0.0
  %2244 = vmatpush.msra.mxu0 0.0
  %2245 = vmatpush.msra.mxu0 0.0
  %2246 = vmatpush.msra.mxu0 0.0
  %2247 = vmatpush.msra.mxu0 0.0
  %2248 = vmatpush.msra.mxu0 0.0
  %2249 = vmatpush.msra.mxu0 0.0
  %2250 = vmatpush.msra.mxu0 0.0
  %2251 = vmatpush.msra.mxu0 0.0
  %2252 = vmatpush.msra.mxu0 0.0
  %2253 = vmatpush.msra.mxu0 0.0
  %2254 = vmatpush.msra.mxu0 0.0
  %2255 = vmatpush.msra.mxu0 0.0
  %2256 = vmatpush.msra.mxu0 %v2179
  %2257 = vmatmul.f32.gmra.mxu0 %v2167
  %v2258 = vpop.f32.mrf.mxu0
  %v2259 = vadd.f32 0.0, %v2258
  %2260 = vdwg.mxu0
  %v2261 = vadd.f32 %v2146, %v2199
  %v2262 = vadd.f32 %v2147, %v2219
  %v2263 = vadd.f32 %v2148, %v2239
  %v2264 = vadd.f32 %v2149, %v2259
  %2265 = vrot.lane.b32.xlu0 %v1480, 112
  %v2266 = vpop.permute.xlu0 %2265
  %2267 = vrot.lane.b32.xlu0 %v1481, 112
  %v2268 = vpop.permute.xlu0 %2267
  %2269 = vrot.lane.b32.xlu0 %v1482, 112
  %v2270 = vpop.permute.xlu0 %2269
  %2271 = vrot.lane.b32.xlu0 %v1483, 112
  %v2272 = vpop.permute.xlu0 %2271
  %v2273 = vsel %vm1157, %v2270, %v2272
  %v2274 = vsel %vm1157, %v2268, %v2270
  %v2275 = vsel %vm1157, %v2266, %v2268
  %v2276 = vsel %vm1157, %v2272, %v2266
  %v2277 = vmul.f32 %v2275, %v1163
  %v2278 = vmul.f32 %v2274, %v1164
  %v2279 = vmul.f32 %v2273, %v1165
  %v2280 = vmul.f32 %v2276, %v1166
  %v2282 = vsel %vm67, %v50, 0
  %v2285 = vsel %vm71, %v2277, 0
  %v2288 = vsel %vm71, %v2278, 0
  %v2291 = vsel %vm71, %v2279, 0
  %v2294 = vsel %vm71, %v2280, 0
  %2296 = vmatpush.msra.mxu0 0.0
  %2297 = vmatpush.msra.mxu0 0.0
  %2298 = vmatpush.msra.mxu0 0.0
  %2299 = vmatpush.msra.mxu0 0.0
  %2300 = vmatpush.msra.mxu0 0.0
  %2301 = vmatpush.msra.mxu0 0.0
  %2302 = vmatpush.msra.mxu0 0.0
  %2303 = vmatpush.msra.mxu0 0.0
  %2304 = vmatpush.msra.mxu0 0.0
  %2305 = vmatpush.msra.mxu0 0.0
  %2306 = vmatpush.msra.mxu0 0.0
  %2307 = vmatpush.msra.mxu0 0.0
  %2308 = vmatpush.msra.mxu0 0.0
  %2309 = vmatpush.msra.mxu0 0.0
  %2310 = vmatpush.msra.mxu0 0.0
  %2311 = vmatpush.msra.mxu0 %v2285
  %2312 = vmatmul.f32.gmra.mxu0 %v2282
  %v2313 = vpop.f32.mrf.mxu0
  %v2314 = vadd.f32 0.0, %v2313
  %2315 = vdwg.mxu0
  %2316 = vmatpush.msra.mxu0 0.0
  %2317 = vmatpush.msra.mxu0 0.0
  %2318 = vmatpush.msra.mxu0 0.0
  %2319 = vmatpush.msra.mxu0 0.0
  %2320 = vmatpush.msra.mxu0 0.0
  %2321 = vmatpush.msra.mxu0 0.0
  %2322 = vmatpush.msra.mxu0 0.0
  %2323 = vmatpush.msra.mxu0 0.0
  %2324 = vmatpush.msra.mxu0 0.0
  %2325 = vmatpush.msra.mxu0 0.0
  %2326 = vmatpush.msra.mxu0 0.0
  %2327 = vmatpush.msra.mxu0 0.0
  %2328 = vmatpush.msra.mxu0 0.0
  %2329 = vmatpush.msra.mxu0 0.0
  %2330 = vmatpush.msra.mxu0 0.0
  %2331 = vmatpush.msra.mxu0 %v2288
  %2332 = vmatmul.f32.gmra.mxu0 %v2282
  %v2333 = vpop.f32.mrf.mxu0
  %v2334 = vadd.f32 0.0, %v2333
  %2335 = vdwg.mxu0
  %2336 = vmatpush.msra.mxu0 0.0
  %2337 = vmatpush.msra.mxu0 0.0
  %2338 = vmatpush.msra.mxu0 0.0
  %2339 = vmatpush.msra.mxu0 0.0
  %2340 = vmatpush.msra.mxu0 0.0
  %2341 = vmatpush.msra.mxu0 0.0
  %2342 = vmatpush.msra.mxu0 0.0
  %2343 = vmatpush.msra.mxu0 0.0
  %2344 = vmatpush.msra.mxu0 0.0
  %2345 = vmatpush.msra.mxu0 0.0
  %2346 = vmatpush.msra.mxu0 0.0
  %2347 = vmatpush.msra.mxu0 0.0
  %2348 = vmatpush.msra.mxu0 0.0
  %2349 = vmatpush.msra.mxu0 0.0
  %2350 = vmatpush.msra.mxu0 0.0
  %2351 = vmatpush.msra.mxu0 %v2291
  %2352 = vmatmul.f32.gmra.mxu0 %v2282
  %v2353 = vpop.f32.mrf.mxu0
  %v2354 = vadd.f32 0.0, %v2353
  %2355 = vdwg.mxu0
  %2356 = vmatpush.msra.mxu0 0.0
  %2357 = vmatpush.msra.mxu0 0.0
  %2358 = vmatpush.msra.mxu0 0.0
  %2359 = vmatpush.msra.mxu0 0.0
  %2360 = vmatpush.msra.mxu0 0.0
  %2361 = vmatpush.msra.mxu0 0.0
  %2362 = vmatpush.msra.mxu0 0.0
  %2363 = vmatpush.msra.mxu0 0.0
  %2364 = vmatpush.msra.mxu0 0.0
  %2365 = vmatpush.msra.mxu0 0.0
  %2366 = vmatpush.msra.mxu0 0.0
  %2367 = vmatpush.msra.mxu0 0.0
  %2368 = vmatpush.msra.mxu0 0.0
  %2369 = vmatpush.msra.mxu0 0.0
  %2370 = vmatpush.msra.mxu0 0.0
  %2371 = vmatpush.msra.mxu0 %v2294
  %2372 = vmatmul.f32.gmra.mxu0 %v2282
  %v2373 = vpop.f32.mrf.mxu0
  %v2374 = vadd.f32 0.0, %v2373
  %2375 = vdwg.mxu0
  %v2376 = vadd.f32 %v2261, %v2314
  %v2377 = vadd.f32 %v2262, %v2334
  %v2378 = vadd.f32 %v2263, %v2354
  %v2379 = vadd.f32 %v2264, %v2374
  %2380 = vrot.lane.b32.xlu0 %v1480, 111
  %v2381 = vpop.permute.xlu0 %2380
  %2382 = vrot.lane.b32.xlu0 %v1481, 111
  %v2383 = vpop.permute.xlu0 %2382
  %2384 = vrot.lane.b32.xlu0 %v1482, 111
  %v2385 = vpop.permute.xlu0 %2384
  %2386 = vrot.lane.b32.xlu0 %v1483, 111
  %v2387 = vpop.permute.xlu0 %2386
  %v2388 = vsel %vm1293, %v2385, %v2387
  %v2389 = vsel %vm1293, %v2383, %v2385
  %v2390 = vsel %vm1293, %v2381, %v2383
  %v2391 = vsel %vm1293, %v2387, %v2381
  %v2392 = vmul.f32 %v2390, %v1299
  %v2393 = vmul.f32 %v2389, %v1300
  %v2394 = vmul.f32 %v2388, %v1301
  %v2395 = vmul.f32 %v2391, %v1302
  %v2397 = vsel %vm67, %v51, 0
  %v2400 = vsel %vm71, %v2392, 0
  %v2403 = vsel %vm71, %v2393, 0
  %v2406 = vsel %vm71, %v2394, 0
  %v2409 = vsel %vm71, %v2395, 0
  %2411 = vmatpush.msra.mxu0 0.0
  %2412 = vmatpush.msra.mxu0 0.0
  %2413 = vmatpush.msra.mxu0 0.0
  %2414 = vmatpush.msra.mxu0 0.0
  %2415 = vmatpush.msra.mxu0 0.0
  %2416 = vmatpush.msra.mxu0 0.0
  %2417 = vmatpush.msra.mxu0 0.0
  %2418 = vmatpush.msra.mxu0 0.0
  %2419 = vmatpush.msra.mxu0 0.0
  %2420 = vmatpush.msra.mxu0 0.0
  %2421 = vmatpush.msra.mxu0 0.0
  %2422 = vmatpush.msra.mxu0 0.0
  %2423 = vmatpush.msra.mxu0 0.0
  %2424 = vmatpush.msra.mxu0 0.0
  %2425 = vmatpush.msra.mxu0 0.0
  %2426 = vmatpush.msra.mxu0 %v2400
  %2427 = vmatmul.f32.gmra.mxu0 %v2397
  %v2428 = vpop.f32.mrf.mxu0
  %v2429 = vadd.f32 0.0, %v2428
  %2430 = vdwg.mxu0
  %2431 = vmatpush.msra.mxu0 0.0
  %2432 = vmatpush.msra.mxu0 0.0
  %2433 = vmatpush.msra.mxu0 0.0
  %2434 = vmatpush.msra.mxu0 0.0
  %2435 = vmatpush.msra.mxu0 0.0
  %2436 = vmatpush.msra.mxu0 0.0
  %2437 = vmatpush.msra.mxu0 0.0
  %2438 = vmatpush.msra.mxu0 0.0
  %2439 = vmatpush.msra.mxu0 0.0
  %2440 = vmatpush.msra.mxu0 0.0
  %2441 = vmatpush.msra.mxu0 0.0
  %2442 = vmatpush.msra.mxu0 0.0
  %2443 = vmatpush.msra.mxu0 0.0
  %2444 = vmatpush.msra.mxu0 0.0
  %2445 = vmatpush.msra.mxu0 0.0
  %2446 = vmatpush.msra.mxu0 %v2403
  %2447 = vmatmul.f32.gmra.mxu0 %v2397
  %v2448 = vpop.f32.mrf.mxu0
  %v2449 = vadd.f32 0.0, %v2448
  %2450 = vdwg.mxu0
  %2451 = vmatpush.msra.mxu0 0.0
  %2452 = vmatpush.msra.mxu0 0.0
  %2453 = vmatpush.msra.mxu0 0.0
  %2454 = vmatpush.msra.mxu0 0.0
  %2455 = vmatpush.msra.mxu0 0.0
  %2456 = vmatpush.msra.mxu0 0.0
  %2457 = vmatpush.msra.mxu0 0.0
  %2458 = vmatpush.msra.mxu0 0.0
  %2459 = vmatpush.msra.mxu0 0.0
  %2460 = vmatpush.msra.mxu0 0.0
  %2461 = vmatpush.msra.mxu0 0.0
  %2462 = vmatpush.msra.mxu0 0.0
  %2463 = vmatpush.msra.mxu0 0.0
  %2464 = vmatpush.msra.mxu0 0.0
  %2465 = vmatpush.msra.mxu0 0.0
  %2466 = vmatpush.msra.mxu0 %v2406
  %2467 = vmatmul.f32.gmra.mxu0 %v2397
  %v2468 = vpop.f32.mrf.mxu0
  %v2469 = vadd.f32 0.0, %v2468
  %2470 = vdwg.mxu0
  %2471 = vmatpush.msra.mxu0 0.0
  %2472 = vmatpush.msra.mxu0 0.0
  %2473 = vmatpush.msra.mxu0 0.0
  %2474 = vmatpush.msra.mxu0 0.0
  %2475 = vmatpush.msra.mxu0 0.0
  %2476 = vmatpush.msra.mxu0 0.0
  %2477 = vmatpush.msra.mxu0 0.0
  %2478 = vmatpush.msra.mxu0 0.0
  %2479 = vmatpush.msra.mxu0 0.0
  %2480 = vmatpush.msra.mxu0 0.0
  %2481 = vmatpush.msra.mxu0 0.0
  %2482 = vmatpush.msra.mxu0 0.0
  %2483 = vmatpush.msra.mxu0 0.0
  %2484 = vmatpush.msra.mxu0 0.0
  %2485 = vmatpush.msra.mxu0 0.0
  %2486 = vmatpush.msra.mxu0 %v2409
  %2487 = vmatmul.f32.gmra.mxu0 %v2397
  %v2488 = vpop.f32.mrf.mxu0
  %v2489 = vadd.f32 0.0, %v2488
  %2490 = vdwg.mxu0
  %v2491 = vadd.f32 %v2376, %v2429
  %v2492 = vadd.f32 %v2377, %v2449
  %v2493 = vadd.f32 %v2378, %v2469
  %v2494 = vadd.f32 %v2379, %v2489
  %2495 = vset.pattern.permute.xlu0 2
  %2496 = vperm.xlu0 %2495, %v25
  %v2497 = vpop.permute.xlu0 %2496
  %v2499 = vadd.f32 %v2491, %v2497
  %v2500 = vadd.f32 %v2492, %v2497
  %v2501 = vadd.f32 %v2493, %v2497
  %v2502 = vadd.f32 %v2494, %v2497
  %v2503 = vmax.f32 %v2499, 0.0
  %v2504 = vmax.f32 %v2500, 0.0
  %v2505 = vmax.f32 %v2501, 0.0
  %v2506 = vmax.f32 %v2502, 0.0
  %v2507 = vsel %vm71, %v2503, 0.0
  %v2508 = vsel %vm71, %v2504, 0.0
  %v2509 = vadd.f32 %v2507, %v2508
  %v2510 = vsel %vm71, %v2505, 0.0
  %v2511 = vadd.f32 %v2509, %v2510
  %v2512 = vsel %vm71, %v2506, 0.0
  %v2513 = vadd.f32 %v2511, %v2512
  %2514 = vadd.xlane.f32.xlu0 %v2513
  %v2515 = vpop.xlane.xlu0 %2514
  %v2516 = vmul.f32 %v2515, 0.001953125
  %v2517 = vmul.f32 %v2503, %v2503
  %v2518 = vmul.f32 %v2504, %v2504
  %v2519 = vmul.f32 %v2505, %v2505
  %v2520 = vmul.f32 %v2506, %v2506
  %v2521 = vsel %vm71, %v2517, 0.0
  %v2522 = vsel %vm71, %v2518, 0.0
  %v2523 = vadd.f32 %v2521, %v2522
  %v2524 = vsel %vm71, %v2519, 0.0
  %v2525 = vadd.f32 %v2523, %v2524
  %v2526 = vsel %vm71, %v2520, 0.0
  %v2527 = vadd.f32 %v2525, %v2526
  %2528 = vadd.xlane.f32.xlu0 %v2527
  %v2529 = vpop.xlane.xlu0 %2528
  %v2530 = vmul.f32 %v2529, 0.001953125
  %v2531 = vmul.f32 %v2516, %v2516
  %v2532 = vsub.f32 %v2530, %v2531
  %v2533 = vadd.f32 %v2532, 1e-05
  %v2534 = vrsqrt.pop %v2533
  %v2535 = vmul.f32 %v2534, %v2533
  %v2536 = vmul.f32 %v2535, %v2534
  %v2537 = vmul.f32 0.5, %v2536
  %v2538 = vsub.f32 1.5, %v2537
  %v2539 = vmul.f32 %v2534, %v2538
  %vm2540 = vweird.f32 %v2533
  %vm2541 = vweird.f32 %v2534
  %vm2542 = vmor %vm2540, %vm2541
  %v2543 = vsel %vm2542, %v2534, %v2539
  %v2544 = vmul.f32 %v25, %v2543
  %v2545 = vmul.f32 %v2516, %v2544
  %2547 = vrot.lane.b32.xlu0 %v2545, 1
  %v2548 = vpop.permute.xlu0 %2547
  %v2550 = vsub.f32 %v25, %v2548
  %2552 = vset.pattern.permute.xlu0 3
  %2553 = vperm.xlu0 %2552, %v2544
  %v2554 = vpop.permute.xlu0 %2553
  %v2556 = vmul.f32 %v2503, %v2554
  %v2557 = vmul.f32 %v2504, %v2554
  %v2558 = vmul.f32 %v2505, %v2554
  %v2559 = vmul.f32 %v2506, %v2554
  %2561 = vset.pattern.permute.xlu0 4
  %2562 = vperm.xlu0 %2561, %v2550
  %v2563 = vpop.permute.xlu0 %2562
  %v2565 = vadd.f32 %v2556, %v2563
  %v2566 = vadd.f32 %v2557, %v2563
  %v2567 = vadd.f32 %v2558, %v2563
  %v2568 = vadd.f32 %v2559, %v2563
  %v2569 = vadd.f32 %v222, %v2565
  %v2570 = vadd.f32 %v223, %v2566
  %v2571 = vadd.f32 %v224, %v2567
  %v2572 = vadd.f32 %v225, %v2568
  %v2573 = vsel %vm71, %v2569, 0.0
  %v2574 = vsel %vm71, %v2570, 0.0
  %v2575 = vadd.f32 %v2573, %v2574
  %v2576 = vsel %vm71, %v2571, 0.0
  %v2577 = vadd.f32 %v2575, %v2576
  %v2578 = vsel %vm71, %v2572, 0.0
  %v2579 = vadd.f32 %v2577, %v2578
  %2580 = vadd.xlane.f32.xlu0 %v2579
  %v2581 = vpop.xlane.xlu0 %2580
  %v2582 = vmul.f32 %v2581, 0.001953125
  %v2583 = vmul.f32 %v2569, %v2569
  %v2584 = vmul.f32 %v2570, %v2570
  %v2585 = vmul.f32 %v2571, %v2571
  %v2586 = vmul.f32 %v2572, %v2572
  %v2587 = vsel %vm71, %v2583, 0.0
  %v2588 = vsel %vm71, %v2584, 0.0
  %v2589 = vadd.f32 %v2587, %v2588
  %v2590 = vsel %vm71, %v2585, 0.0
  %v2591 = vadd.f32 %v2589, %v2590
  %v2592 = vsel %vm71, %v2586, 0.0
  %v2593 = vadd.f32 %v2591, %v2592
  %2594 = vadd.xlane.f32.xlu0 %v2593
  %v2595 = vpop.xlane.xlu0 %2594
  %v2596 = vmul.f32 %v2595, 0.001953125
  %v2597 = vmul.f32 %v2582, %v2582
  %v2598 = vsub.f32 %v2596, %v2597
  %v2599 = vadd.f32 %v2598, 1e-05
  %v2600 = vrsqrt.pop %v2599
  %v2601 = vmul.f32 %v2600, %v2599
  %v2602 = vmul.f32 %v2601, %v2600
  %v2603 = vmul.f32 0.5, %v2602
  %v2604 = vsub.f32 1.5, %v2603
  %v2605 = vmul.f32 %v2600, %v2604
  %vm2606 = vweird.f32 %v2599
  %vm2607 = vweird.f32 %v2600
  %vm2608 = vmor %vm2606, %vm2607
  %v2609 = vsel %vm2608, %v2600, %v2605
  %v2610 = vmul.f32 %v25, %v2609
  %v2611 = vmul.f32 %v2582, %v2610
  %2613 = vrot.lane.b32.xlu0 %v2611, 1
  %v2614 = vpop.permute.xlu0 %2613
  %v2616 = vsub.f32 %v25, %v2614
  %2618 = vset.pattern.permute.xlu0 3
  %2619 = vperm.xlu0 %2618, %v2610
  %v2620 = vpop.permute.xlu0 %2619
  %v2622 = vmul.f32 %v2569, %v2620
  %v2623 = vmul.f32 %v2570, %v2620
  %v2624 = vmul.f32 %v2571, %v2620
  %v2625 = vmul.f32 %v2572, %v2620
  %2627 = vset.pattern.permute.xlu0 4
  %2628 = vperm.xlu0 %2627, %v2616
  %v2629 = vpop.permute.xlu0 %2628
  %v2631 = vadd.f32 %v2622, %v2629
  %v2632 = vadd.f32 %v2623, %v2629
  %v2633 = vadd.f32 %v2624, %v2629
  %v2634 = vadd.f32 %v2625, %v2629
  %v2639 = vrot.slane %v2632, 4
  %v2640 = vrot.slane %v2634, 4
  %v2641 = vsel %vm71, %v2631, %v2639
  %v2642 = vsel %vm71, %v2633, %v2640
  %2645 = vst [vmem:[%s6] sm:$0xff] %v2641
  %2646 = vst [vmem:[%s6 + $0x8] sm:$0xff] %v2642
  // Predicated region
  $region26: #{resnet1_conv2d_block_forward.1} parent=0 // pred_check
    _
  $region27: #{resnet1_conv2d_block_forward.1} parent=0 // pred_check_branch
    %2648 = sbr.rel (0) target = $region29
  $region28: #{resnet1_conv2d_block_forward.1} parent=0 // pred_region
    _
  $region29: #{resnet1_conv2d_block_forward.1} parent=0 // pred_fallthru
    _
  // Predicated region
  $region30: #{resnet1_conv2d_block_forward.1} parent=0 // pred_check
    _
  $region31: #{resnet1_conv2d_block_forward.1} parent=0 // pred_check_branch
    %2650 = sbr.rel (0) target = $region33
  $region32: #{resnet1_conv2d_block_forward.1} parent=0 // pred_region
    _
  $region33: #{resnet1_conv2d_block_forward.1} parent=0 // pred_fallthru
    _

</llo_original>
